<compile_context>
chip_gen: v5e
topology: v5e:2x2
jax: 0.10.0
libtpu: 0.0.40
codegen_flags: <defaults>
</compile_context>

<pallas_src>
import functools

import jax
import jax.numpy as jnp
from jax.experimental import pallas as pl
from jax.experimental.pallas import tpu as pltpu


# ----------------------------------------------------------------------------
# Pallas kernel
# ----------------------------------------------------------------------------
def _encoder_kernel(meta_ref, mask_ref, emb_ref, wih_ref, whh_ref, bias_ref,
                    linw_ref, linb_ref,
                    out_ref, enc_ref,
                    xbuf, h_scr, c_scr, cat_buf, *seq_bufs, time_chunk):
    """Fused embedding-LSTM-linear forward.

    meta_ref : (2,)          int32  SMEM  [tmax, n_valid_proj_chunks]
    mask_ref : (T*B, ML)     f32    VMEM  1.0 where t < length[b] (ML=min(E,128)|1)
    emb_ref  : (T*B, E)      f32/bf16     embedded input, row t*B+b == (t, b)
    wih_ref  : (L, E, 4E)    f32/bf16     fused input->hidden weights, gates [i,f,o,g]
    whh_ref  : (L, E, 4E)    f32/bf16     fused hidden->hidden weights
    bias_ref : (L, 1, 4E)    f32          b_ih + b_hh, fused gate order
    linw_ref : (2LE, H)      f32/bf16     final linear weight (pre-transposed)
    linb_ref : (1, H)        f32
    out_ref  : (T*B, E)      f32          last-layer outputs, zero past lengths
    enc_ref  : (B, H)        f32          linear(cat(h, c).view(B, -1))
    xbuf     : (T*B, 4E)     f32    VMEM  hoisted fused input projection
    h_scr/c_scr : (B, E)     f32    VMEM  recurrent state (reused per layer)
    cat_buf  : (2L*B, E)     f32    VMEM  torch.cat((h, c)) row-major
    seq_bufs : 0..2 x (T*B, E)      VMEM  inter-layer ping-pong buffers
    """
    TB, E = emb_ref.shape
    B = h_scr.shape[0]
    T = TB // B
    L = wih_ref.shape[0]
    H = enc_ref.shape[1]
    w_dtype = wih_ref.dtype
    chunk_rows = time_chunk * B

    tmax = meta_ref[0]                 # scalar loop bound (max valid length)
    nvc = meta_ref[1]                  # ceil(tmax / time_chunk)
    half = tmax >> 1
    has_odd = (tmax & 1) == 1

    for layer in range(L):
        is_last = layer == L - 1
        src = emb_ref if layer == 0 else seq_bufs[(layer - 1) % 2]
        seq_dst = None if is_last else seq_bufs[layer % 2]

        # ---- hoisted fused input projection, bounded by tmax (chunked). ----
        @pl.loop(0, nvc)
        def _proj(ci, layer=layer, src=src):
            r0 = pl.multiple_of(ci * chunk_rows, chunk_rows)
            x = src[pl.ds(r0, chunk_rows), :].astype(w_dtype)
            xbuf[pl.ds(r0, chunk_rows), :] = (
                jnp.dot(x, wih_ref[layer], preferred_element_type=jnp.float32)
                + bias_ref[layer])

        h_scr[...] = jnp.zeros_like(h_scr)
        c_scr[...] = jnp.zeros_like(c_scr)

        # ---- serial recurrence: one fused (B,E)@(E,4E) matmul per step. ----
        def cell(t, layer=layer, is_last=is_last, seq_dst=seq_dst):
            r0 = pl.multiple_of(t * B, B)
            h = h_scr[...]
            c = c_scr[...]
            z = xbuf[pl.ds(r0, B), :] + jnp.dot(
                h.astype(w_dtype), whh_ref[layer],
                preferred_element_type=jnp.float32)          # (B, 4E)
            sg = jax.nn.sigmoid(z[:, :3 * E])                # gates i, f, o
            gi = sg[:, :E]
            gf = sg[:, E:2 * E]
            go = sg[:, 2 * E:]
            gg = jnp.tanh(z[:, 3 * E:])                      # gate g
            c_new = gf * c + gi * gg
            h_new = go * jnp.tanh(c_new)

            # packed-sequence handling via arithmetic masking (no selects).
            m = mask_ref[pl.ds(r0, B), :]                    # (B, ML)
            h_out = m * h_new                                # zero past length
            h_scr[...] = h + m * (h_new - h)
            c_scr[...] = c + m * (c_new - c)
            if is_last:
                out_ref[pl.ds(r0, B), :] = h_out
            else:
                seq_dst[pl.ds(r0, B), :] = h_out.astype(seq_dst.dtype)

        @pl.loop(0, half)                                    # 2x manual unroll
        def _steps(k, cell=cell):
            t0 = 2 * k
            cell(t0)
            cell(t0 + 1)

        @pl.when(has_odd)
        def _tail(cell=cell):
            cell(tmax - 1)

        # Zero rows past tmax: implements pad_packed_sequence zero-padding on the
        # final layer and keeps the next layer's chunk-rounded reads defined.
        dst = out_ref if is_last else seq_dst

        @pl.loop(tmax, T)
        def _zero_tail(t, dst=dst):
            dst[pl.ds(t * B, B), :] = jnp.zeros((B, E), dst.dtype)

        # torch.cat((h, c)) layout: row l*B + b for h, (L+l)*B + b for c.
        cat_buf[pl.ds(layer * B, B), :] = h_scr[...]
        cat_buf[pl.ds((L + layer) * B, B), :] = c_scr[...]

    # ---- fused final linear on state = cat(h, c).view(B, 2*L*E). ----
    # state[r, j*E:(j+1)*E] == cat_buf[r*2L + j, :]  (PyTorch .view quirk).
    lw_dtype = linw_ref.dtype
    enc = jnp.zeros((B, H), jnp.float32)
    for j in range(2 * L):
        rows = [cat_buf[pl.ds(j + r * 2 * L, 1), :] for r in range(B)]
        a_j = rows[0] if B == 1 else jnp.concatenate(rows, axis=0)  # (B, E)
        enc = enc + jnp.dot(a_j.astype(lw_dtype),
                            linw_ref[pl.ds(j * E, E), :],
                            preferred_element_type=jnp.float32)
    enc_ref[...] = enc + linb_ref[...]


# ----------------------------------------------------------------------------
# Wrapper
# ----------------------------------------------------------------------------
_VMEM = pl.BlockSpec(memory_space=pltpu.MemorySpace.VMEM)
_SMEM = pl.BlockSpec(memory_space=pltpu.MemorySpace.SMEM)


def _pick_time_chunk(T, B):
    """Largest divisor of T such that a projection chunk is <= ~512 rows."""
    target = max(1, 512 // max(B, 1))
    best = 1
    for d in range(1, T + 1):
        if T % d == 0 and d <= target:
            best = d
    return best


@functools.partial(jax.jit, static_argnames=("matmul_dtype",))
def question_encoder_forward(question, lengths, params, matmul_dtype=jnp.float32):
    """question: (B, T) int32 token ids; lengths: (B,) int32 valid lengths."""
    emb_table = params["embedding"]          # (V, E), row 0 == 0 (padding_idx)
    wih = params["w_ih_f"]                   # (L, E, 4E) fused, gates [i,f,o,g]
    whh = params["w_hh_f"]                   # (L, E, 4E)
    bias = params["b_f"]                     # (L, 1, 4E)  == b_ih + b_hh
    lin_wt = params["lin_w_t"]               # (2*L*E, H)
    lin_b = params["lin_b"].reshape(1, -1)   # (1, H)

    B, T = question.shape
    E = emb_table.shape[1]
    L = wih.shape[0]
    H = lin_wt.shape[1]
    mm_dtype = jnp.dtype(matmul_dtype)

    # Fused gather -> time-major (T, B, E); (T*B, E) flatten is a free reshape
    # (row t*B+b == (t, b)).  Stored in the matmul dtype (bf16 halves VMEM/DMA).
    embed_flat = jnp.take(emb_table, question.T, axis=0).astype(
        mm_dtype).reshape(T * B, E)

    lengths_i32 = lengths.astype(jnp.int32)
    tmax = jnp.minimum(jnp.max(lengths_i32), T).astype(jnp.int32)
    TC = _pick_time_chunk(T, B)
    nvc = (tmax + TC - 1) // TC                          # valid projection chunks
    meta = jnp.stack([tmax, nvc]).astype(jnp.int32)      # SMEM scalars

    # Validity mask precomputed once, pre-broadcast to min(E, 128) lanes
    # ((T*B, 1) pads to 128 lanes anyway, so this is VMEM-free).
    ML = E if E <= 128 else 1
    mask_tb = (jnp.arange(T, dtype=jnp.int32)[:, None]
               < lengths_i32[None, :]).astype(jnp.float32)           # (T, B)
    mask_flat = jnp.broadcast_to(mask_tb.reshape(T * B, 1), (T * B, ML))

    n_buf = 0 if L == 1 else (1 if L == 2 else 2)
    scratch = ([pltpu.VMEM((T * B, 4 * E), jnp.float32),    # fused x-projection
                pltpu.VMEM((B, E), jnp.float32),             # h state
                pltpu.VMEM((B, E), jnp.float32),             # c state
                pltpu.VMEM((2 * L * B, E), jnp.float32)]     # cat(h, c)
               + [pltpu.VMEM((T * B, E), mm_dtype)] * n_buf)  # layer ping-pong

    # Explicit scoped-VMEM budget (review item): ~2x resident set, clamped.
    it = mm_dtype.itemsize
    est_bytes = (T * B * E * it                      # embedded input
                 + T * B * ML * 4                    # mask
                 + 2 * L * E * 4 * E * it            # fused LSTM weights
                 + L * 4 * E * 4                     # fused bias
                 + 2 * L * E * H * it + H * 4        # linear
                 + T * B * E * 4 + B * H * 4         # outputs
                 + T * B * 4 * E * 4                 # xbuf
                 + (2 * B + 2 * L * B) * E * 4       # h, c, cat_buf
                 + n_buf * T * B * E * it)           # ping-pong
    vmem_limit = int(min(max(2 * est_bytes + (4 << 20), 32 << 20), 100 << 20))

    out_flat, encoded = pl.pallas_call(
        functools.partial(_encoder_kernel, time_chunk=TC),
        out_shape=(jax.ShapeDtypeStruct((T * B, E), jnp.float32),
                   jax.ShapeDtypeStruct((B, H), jnp.float32)),
        in_specs=[_SMEM] + [_VMEM] * 7,
        out_specs=(_VMEM, _VMEM),
        scratch_shapes=scratch,
        compiler_params=pltpu.CompilerParams(vmem_limit_bytes=vmem_limit),
    )(meta, mask_flat, embed_flat,
      wih.astype(mm_dtype), whh.astype(mm_dtype), bias,
      lin_wt.astype(mm_dtype), lin_b)

    # batch_first output (B, T, E).
    unpacked = out_flat.reshape(T, B, E).transpose(1, 0, 2)
    return unpacked, encoded


# ----------------------------------------------------------------------------
# Pure-JAX reference (PyTorch LSTM semantics, gate order i, f, g, o)
# ----------------------------------------------------------------------------
def _reference_forward(question, lengths, params):
    emb_table = params["embedding"]
    wih, whh = params["w_ih"], params["w_hh"]
    bias = params["b_ih"] + params["b_hh"]           # (L, 4E)
    lin_w, lin_b = params["lin_w"], params["lin_b"]  # (H, 2LE), (H,)

    B, T = question.shape
    E = emb_table.shape[1]
    L = wih.shape[0]

    x = jnp.take(emb_table, question, axis=0)        # (B, T, E)
    hs, cs = [], []
    for l in range(L):
        h = jnp.zeros((B, E), jnp.float32)
        c = jnp.zeros((B, E), jnp.float32)
        outs = []
        for t in range(T):
            g = x[:, t, :] @ wih[l].T + h @ whh[l].T + bias[l]
            i = jax.nn.sigmoid(g[:, :E])
            f = jax.nn.sigmoid(g[:, E:2 * E])
            gg = jnp.tanh(g[:, 2 * E:3 * E])
            o = jax.nn.sigmoid(g[:, 3 * E:])
            c_new = f * c + i * gg
            h_new = o * jnp.tanh(c_new)
            valid = (t < lengths)[:, None]
            h = jnp.where(valid, h_new, h)
            c = jnp.where(valid, c_new, c)
            outs.append(jnp.where(valid, h_new, 0.0))
        x = jnp.stack(outs, axis=1)
        hs.append(h)
        cs.append(c)
    state = jnp.concatenate([jnp.stack(hs), jnp.stack(cs)], axis=0).reshape(B, -1)
    return x, state @ lin_w.T + lin_b


# ----------------------------------------------------------------------------
# Deterministic parameter construction + demo
# ----------------------------------------------------------------------------
def make_params(key, vocab_dim, embed_dim, num_layers, hidden_dim):
    ks = jax.random.split(key, 7)
    E, L, H = embed_dim, num_layers, hidden_dim

    emb = 0.1 * jax.random.normal(ks[0], (vocab_dim, E), jnp.float32)
    emb = emb.at[0].set(0.0)                                  # padding_idx=0

    w_ih = 0.1 * jax.random.normal(ks[1], (L, 4 * E, E), jnp.float32)
    w_hh = 0.1 * jax.random.normal(ks[2], (L, 4 * E, E), jnp.float32)
    b_ih = 0.1 * jax.random.normal(ks[3], (L, 4 * E), jnp.float32)
    b_hh = 0.1 * jax.random.normal(ks[4], (L, 4 * E), jnp.float32)
    lin_w = 0.1 * jax.random.normal(ks[5], (H, 2 * L * E), jnp.float32)
    lin_b = 0.1 * jax.random.normal(ks[6], (H,), jnp.float32)

    # Fused kernel layouts: gates reordered [i, f, o, g] (sigmoid gates occupy a
    # contiguous 3E-lane slab, tanh gate the last E lanes) and pre-transposed to
    # (E_in, 4*E_out) so x @ W yields every gate pre-activation in one matmul.
    perm = jnp.array([0, 1, 3, 2], dtype=jnp.int32)

    def _fuse(w):
        w4 = jnp.take(w.reshape(L, 4, E, E), perm, axis=1)    # (L, 4, out, in)
        return jnp.transpose(w4, (0, 3, 1, 2)).reshape(L, E, 4 * E)

    b4 = jnp.take((b_ih + b_hh).reshape(L, 4, E), perm, axis=1)

    return {
        "embedding": emb,
        # raw (PyTorch layout) weights, used by the reference
        "w_ih": w_ih, "w_hh": w_hh, "b_ih": b_ih, "b_hh": b_hh,
        "lin_w": lin_w, "lin_b": lin_b,
        # fused kernel layouts
        "w_ih_f": _fuse(w_ih), "w_hh_f": _fuse(w_hh),
        "b_f": b4.reshape(L, 1, 4 * E),
        "lin_w_t": lin_w.T,                                   # (2LE, H)
    }


if __name__ == "__main__":
    VOCAB, EMBED, LAYERS, HIDDEN = 50, 32, 2, 32
    B, T = 2, 8

    key = jax.random.PRNGKey(0)
    pkey, qkey = jax.random.split(key)
    params = make_params(pkey, VOCAB, EMBED, LAYERS, HIDDEN)

    # lengths sorted descending (pack_padded_sequence enforce_sorted=True)
    lengths = jnp.array([8, 5], dtype=jnp.int32)
    question = jax.random.randint(qkey, (B, T), 1, VOCAB, dtype=jnp.int32)
    tmask = jnp.arange(T)[None, :] < lengths[:, None]
    question = jnp.where(tmask, question, 0)          # padded positions -> id 0

    ref_unpacked, ref_encoded = _reference_forward(question, lengths, params)

    # f32 matmul path: tight check against the pure-JAX reference.
    unpacked, encoded = question_encoder_forward(question, lengths, params)
    jax.block_until_ready((unpacked, encoded))
    assert unpacked.shape == (B, T, EMBED)
    assert encoded.shape == (B, HIDDEN)
    assert jnp.allclose(unpacked, ref_unpacked, atol=2e-4, rtol=2e-4)
    assert jnp.allclose(encoded, ref_encoded, atol=2e-4, rtol=2e-4)

    # bf16 MXU-operand path (v6e/v7x production config): f32 accumulation and
    # f32 h/c state bound the drift; looser tolerance vs. the f32 reference.
    unpacked_bf, encoded_bf = question_encoder_forward(
        question, lengths, params, matmul_dtype=jnp.bfloat16)
    jax.block_until_ready((unpacked_bf, encoded_bf))
    assert jnp.allclose(unpacked_bf, ref_unpacked, atol=5e-2, rtol=5e-2)
    assert jnp.allclose(encoded_bf, ref_encoded, atol=5e-2, rtol=5e-2)

    print("KERNEL_OK")
</pallas_src>

<mosaic_0001>
module attributes {stable_mosaic.version = 11 : i64} {
  func.func @_encoder_kernel(%arg0: memref<2xi32, #tpu.memory_space<smem>>, %arg1: memref<16x32xf32, #tpu.memory_space<vmem>>, %arg2: memref<16x32xf32, #tpu.memory_space<vmem>>, %arg3: memref<2x32x128xf32, #tpu.memory_space<vmem>>, %arg4: memref<2x32x128xf32, #tpu.memory_space<vmem>>, %arg5: memref<2x1x128xf32, #tpu.memory_space<vmem>>, %arg6: memref<128x32xf32, #tpu.memory_space<vmem>>, %arg7: memref<1x32xf32, #tpu.memory_space<vmem>>, %arg8: memref<16x32xf32, #tpu.memory_space<vmem>>, %arg9: memref<2x32xf32, #tpu.memory_space<vmem>>, %arg10: memref<16x128xf32, #tpu.memory_space<vmem>>, %arg11: memref<2x32xf32, #tpu.memory_space<vmem>>, %arg12: memref<2x32xf32, #tpu.memory_space<vmem>>, %arg13: memref<8x32xf32, #tpu.memory_space<vmem>>, %arg14: memref<16x32xf32, #tpu.memory_space<vmem>>) attributes {dimension_semantics = [], scalar_prefetch = 0 : i64, scratch_operands = 5 : i64, tpu.core_type = #tpu.core_type<tc>} {
    %c0 = arith.constant 0 : index
    %0 = memref.load %arg0[%c0] : memref<2xi32, #tpu.memory_space<smem>>
    %c1 = arith.constant 1 : index
    %1 = memref.load %arg0[%c1] : memref<2xi32, #tpu.memory_space<smem>>
    %c1_i32 = arith.constant 1 : i32
    %2 = arith.shrsi %0, %c1_i32 : i32
    %c1_i32_0 = arith.constant 1 : i32
    %3 = arith.andi %0, %c1_i32_0 : i32
    %c1_i32_1 = arith.constant 1 : i32
    %4 = arith.cmpi eq, %3, %c1_i32_1 : i32
    %c0_i32 = arith.constant 0 : i32
    %5 = arith.subi %1, %c0_i32 : i32
    %c1_i32_2 = arith.constant 1 : i32
    %c1_i32_3 = arith.constant 1 : i32
    %6 = arith.subi %c1_i32_2, %c1_i32_3 : i32
    %7 = arith.addi %5, %6 : i32
    %c1_i32_4 = arith.constant 1 : i32
    %8 = arith.divsi %7, %c1_i32_4 : i32
    %c1_i32_5 = arith.constant 1 : i32
    %c0_i32_6 = arith.constant 0 : i32
    %c0_i32_7 = arith.constant 0 : i32
    %9 = arith.subi %8, %c0_i32_7 : i32
    %10 = arith.addi %c0_i32_7, %9 : i32
    %c1_i32_8 = arith.constant 1 : i32
    scf.for %arg15 = %c0_i32_7 to %10 step %c1_i32_8  : i32 {
      %90 = arith.muli %arg15, %c1_i32_5 : i32
      %91 = arith.addi %c0_i32_6, %90 : i32
      %c16_i32 = arith.constant 16 : i32
      %92 = arith.muli %91, %c16_i32 : i32
      %93 = tpu.assume_multiple %92, 16 : i32
      %94 = arith.index_cast %93 : i32 to index
      %c0_99 = arith.constant 0 : index
      %95 = vector.load %arg2[%94, %c0_99] : memref<16x32xf32, #tpu.memory_space<vmem>>, vector<16x32xf32>
      %c0_100 = arith.constant 0 : index
      %c0_101 = arith.constant 0 : index
      %c0_102 = arith.constant 0 : index
      %96 = vector.load %arg3[%c0_100, %c0_101, %c0_102] : memref<2x32x128xf32, #tpu.memory_space<vmem>>, vector<1x32x128xf32>
      %97 = vector.shape_cast %96 : vector<1x32x128xf32> to vector<32x128xf32>
      %cst_103 = arith.constant dense<0.000000e+00> : vector<16x128xf32>
      %98 = tpu.matmul %95, %97, %cst_103 {dimension_numbers = #tpu.dot_dimension_numbers<[1], [0], [0], [1], [0, 0, 1, 1], [], []>} : vector<16x32xf32>, vector<32x128xf32>, vector<16x128xf32> -> vector<16x128xf32>
      %c0_104 = arith.constant 0 : index
      %c0_105 = arith.constant 0 : index
      %c0_106 = arith.constant 0 : index
      %99 = vector.load %arg5[%c0_104, %c0_105, %c0_106] : memref<2x1x128xf32, #tpu.memory_space<vmem>>, vector<1x1x128xf32>
      %100 = vector.shape_cast %99 : vector<1x1x128xf32> to vector<1x128xf32>
      %101 = vector.broadcast %100 : vector<1x128xf32> to vector<16x128xf32>
      %102 = arith.addf %98, %101 : vector<16x128xf32>
      %103 = arith.index_cast %93 : i32 to index
      %c0_107 = arith.constant 0 : index
      %104 = vector.load %arg10[%103, %c0_107] : memref<16x128xf32, #tpu.memory_space<vmem>>, vector<16x128xf32>
      tpu.vector_store %arg10[%103, %c0_107], %102 {strides = array<i32>} : memref<16x128xf32, #tpu.memory_space<vmem>>, vector<16x128xf32>,
    }
    %cst = arith.constant 0.000000e+00 : f32
    %11 = vector.broadcast %cst : f32 to vector<2x32xf32>
    %c0_9 = arith.constant 0 : index
    %c0_10 = arith.constant 0 : index
    %12 = vector.load %arg11[%c0_9, %c0_10] : memref<2x32xf32, #tpu.memory_space<vmem>>, vector<2x32xf32>
    tpu.vector_store %arg11[%c0_9, %c0_10], %11 {strides = array<i32>} : memref<2x32xf32, #tpu.memory_space<vmem>>, vector<2x32xf32>,
    %cst_11 = arith.constant 0.000000e+00 : f32
    %13 = vector.broadcast %cst_11 : f32 to vector<2x32xf32>
    %c0_12 = arith.constant 0 : index
    %c0_13 = arith.constant 0 : index
    %14 = vector.load %arg12[%c0_12, %c0_13] : memref<2x32xf32, #tpu.memory_space<vmem>>, vector<2x32xf32>
    tpu.vector_store %arg12[%c0_12, %c0_13], %13 {strides = array<i32>} : memref<2x32xf32, #tpu.memory_space<vmem>>, vector<2x32xf32>,
    %c0_i32_14 = arith.constant 0 : i32
    %15 = arith.subi %2, %c0_i32_14 : i32
    %c1_i32_15 = arith.constant 1 : i32
    %c1_i32_16 = arith.constant 1 : i32
    %16 = arith.subi %c1_i32_15, %c1_i32_16 : i32
    %17 = arith.addi %15, %16 : i32
    %c1_i32_17 = arith.constant 1 : i32
    %18 = arith.divsi %17, %c1_i32_17 : i32
    %c1_i32_18 = arith.constant 1 : i32
    %c0_i32_19 = arith.constant 0 : i32
    %c0_i32_20 = arith.constant 0 : i32
    %19 = arith.subi %18, %c0_i32_20 : i32
    %20 = arith.addi %c0_i32_20, %19 : i32
    %c1_i32_21 = arith.constant 1 : i32
    scf.for %arg15 = %c0_i32_20 to %20 step %c1_i32_21  : i32 {
      %90 = arith.muli %arg15, %c1_i32_18 : i32
      %91 = arith.addi %c0_i32_19, %90 : i32
      %c2_i32 = arith.constant 2 : i32
      %92 = arith.muli %c2_i32, %91 : i32
      %c2_i32_99 = arith.constant 2 : i32
      %93 = arith.muli %92, %c2_i32_99 : i32
      %94 = tpu.assume_multiple %93, 2 : i32
      %c0_100 = arith.constant 0 : index
      %c0_101 = arith.constant 0 : index
      %95 = vector.load %arg11[%c0_100, %c0_101] : memref<2x32xf32, #tpu.memory_space<vmem>>, vector<2x32xf32>
      %c0_102 = arith.constant 0 : index
      %c0_103 = arith.constant 0 : index
      %96 = vector.load %arg12[%c0_102, %c0_103] : memref<2x32xf32, #tpu.memory_space<vmem>>, vector<2x32xf32>
      %97 = arith.index_cast %94 : i32 to index
      %c0_104 = arith.constant 0 : index
      %98 = vector.load %arg10[%97, %c0_104] : memref<16x128xf32, #tpu.memory_space<vmem>>, vector<2x128xf32>
      %c0_105 = arith.constant 0 : index
      %c0_106 = arith.constant 0 : index
      %c0_107 = arith.constant 0 : index
      %99 = vector.load %arg4[%c0_105, %c0_106, %c0_107] : memref<2x32x128xf32, #tpu.memory_space<vmem>>, vector<1x32x128xf32>
      %100 = vector.shape_cast %99 : vector<1x32x128xf32> to vector<32x128xf32>
      %cst_108 = arith.constant dense<0.000000e+00> : vector<2x128xf32>
      %101 = tpu.matmul %95, %100, %cst_108 {dimension_numbers = #tpu.dot_dimension_numbers<[1], [0], [0], [1], [0, 0, 1, 1], [], []>} : vector<2x32xf32>, vector<32x128xf32>, vector<2x128xf32> -> vector<2x128xf32>
      %102 = arith.addf %98, %101 : vector<2x128xf32>
      %103 = vector.extract_strided_slice %102 {offsets = [0, 0], sizes = [2, 96], strides = [1, 1]} : vector<2x128xf32> to vector<2x96xf32>
      %104 = arith.negf %103 : vector<2x96xf32>
      %105 = math.exp %104 : vector<2x96xf32>
      %cst_109 = arith.constant 1.000000e+00 : f32
      %106 = vector.broadcast %cst_109 : f32 to vector<2x96xf32>
      %107 = arith.addf %106, %105 : vector<2x96xf32>
      %108 = arith.divf %106, %107 : vector<2x96xf32>
      %109 = vector.extract_strided_slice %108 {offsets = [0, 0], sizes = [2, 32], strides = [1, 1]} : vector<2x96xf32> to vector<2x32xf32>
      %110 = vector.extract_strided_slice %108 {offsets = [0, 32], sizes = [2, 32], strides = [1, 1]} : vector<2x96xf32> to vector<2x32xf32>
      %111 = vector.extract_strided_slice %108 {offsets = [0, 64], sizes = [2, 32], strides = [1, 1]} : vector<2x96xf32> to vector<2x32xf32>
      %112 = vector.extract_strided_slice %102 {offsets = [0, 96], sizes = [2, 32], strides = [1, 1]} : vector<2x128xf32> to vector<2x32xf32>
      %113 = math.tanh %112 : vector<2x32xf32>
      %114 = arith.mulf %110, %96 : vector<2x32xf32>
      %115 = arith.mulf %109, %113 : vector<2x32xf32>
      %116 = arith.addf %114, %115 : vector<2x32xf32>
      %117 = math.tanh %116 : vector<2x32xf32>
      %118 = arith.mulf %111, %117 : vector<2x32xf32>
      %119 = arith.index_cast %94 : i32 to index
      %c0_110 = arith.constant 0 : index
      %120 = vector.load %arg1[%119, %c0_110] : memref<16x32xf32, #tpu.memory_space<vmem>>, vector<2x32xf32>
      %121 = arith.mulf %120, %118 : vector<2x32xf32>
      %122 = arith.subf %118, %95 : vector<2x32xf32>
      %123 = arith.mulf %120, %122 : vector<2x32xf32>
      %124 = arith.addf %95, %123 : vector<2x32xf32>
      %c0_111 = arith.constant 0 : index
      %c0_112 = arith.constant 0 : index
      %125 = vector.load %arg11[%c0_111, %c0_112] : memref<2x32xf32, #tpu.memory_space<vmem>>, vector<2x32xf32>
      tpu.vector_store %arg11[%c0_111, %c0_112], %124 {strides = array<i32>} : memref<2x32xf32, #tpu.memory_space<vmem>>, vector<2x32xf32>,
      %126 = arith.subf %116, %96 : vector<2x32xf32>
      %127 = arith.mulf %120, %126 : vector<2x32xf32>
      %128 = arith.addf %96, %127 : vector<2x32xf32>
      %c0_113 = arith.constant 0 : index
      %c0_114 = arith.constant 0 : index
      %129 = vector.load %arg12[%c0_113, %c0_114] : memref<2x32xf32, #tpu.memory_space<vmem>>, vector<2x32xf32>
      tpu.vector_store %arg12[%c0_113, %c0_114], %128 {strides = array<i32>} : memref<2x32xf32, #tpu.memory_space<vmem>>, vector<2x32xf32>,
      %130 = arith.index_cast %94 : i32 to index
      %c0_115 = arith.constant 0 : index
      %131 = vector.load %arg14[%130, %c0_115] : memref<16x32xf32, #tpu.memory_space<vmem>>, vector<2x32xf32>
      tpu.vector_store %arg14[%130, %c0_115], %121 {strides = array<i32>} : memref<16x32xf32, #tpu.memory_space<vmem>>, vector<2x32xf32>,
      %c1_i32_116 = arith.constant 1 : i32
      %132 = arith.addi %92, %c1_i32_116 : i32
      %c2_i32_117 = arith.constant 2 : i32
      %133 = arith.muli %132, %c2_i32_117 : i32
      %134 = tpu.assume_multiple %133, 2 : i32
      %c0_118 = arith.constant 0 : index
      %c0_119 = arith.constant 0 : index
      %135 = vector.load %arg11[%c0_118, %c0_119] : memref<2x32xf32, #tpu.memory_space<vmem>>, vector<2x32xf32>
      %c0_120 = arith.constant 0 : index
      %c0_121 = arith.constant 0 : index
      %136 = vector.load %arg12[%c0_120, %c0_121] : memref<2x32xf32, #tpu.memory_space<vmem>>, vector<2x32xf32>
      %137 = arith.index_cast %134 : i32 to index
      %c0_122 = arith.constant 0 : index
      %138 = vector.load %arg10[%137, %c0_122] : memref<16x128xf32, #tpu.memory_space<vmem>>, vector<2x128xf32>
      %c0_123 = arith.constant 0 : index
      %c0_124 = arith.constant 0 : index
      %c0_125 = arith.constant 0 : index
      %139 = vector.load %arg4[%c0_123, %c0_124, %c0_125] : memref<2x32x128xf32, #tpu.memory_space<vmem>>, vector<1x32x128xf32>
      %140 = vector.shape_cast %139 : vector<1x32x128xf32> to vector<32x128xf32>
      %cst_126 = arith.constant dense<0.000000e+00> : vector<2x128xf32>
      %141 = tpu.matmul %135, %140, %cst_126 {dimension_numbers = #tpu.dot_dimension_numbers<[1], [0], [0], [1], [0, 0, 1, 1], [], []>} : vector<2x32xf32>, vector<32x128xf32>, vector<2x128xf32> -> vector<2x128xf32>
      %142 = arith.addf %138, %141 : vector<2x128xf32>
      %143 = vector.extract_strided_slice %142 {offsets = [0, 0], sizes = [2, 96], strides = [1, 1]} : vector<2x128xf32> to vector<2x96xf32>
      %144 = arith.negf %143 : vector<2x96xf32>
      %145 = math.exp %144 : vector<2x96xf32>
      %cst_127 = arith.constant 1.000000e+00 : f32
      %146 = vector.broadcast %cst_127 : f32 to vector<2x96xf32>
      %147 = arith.addf %146, %145 : vector<2x96xf32>
      %148 = arith.divf %146, %147 : vector<2x96xf32>
      %149 = vector.extract_strided_slice %148 {offsets = [0, 0], sizes = [2, 32], strides = [1, 1]} : vector<2x96xf32> to vector<2x32xf32>
      %150 = vector.extract_strided_slice %148 {offsets = [0, 32], sizes = [2, 32], strides = [1, 1]} : vector<2x96xf32> to vector<2x32xf32>
      %151 = vector.extract_strided_slice %148 {offsets = [0, 64], sizes = [2, 32], strides = [1, 1]} : vector<2x96xf32> to vector<2x32xf32>
      %152 = vector.extract_strided_slice %142 {offsets = [0, 96], sizes = [2, 32], strides = [1, 1]} : vector<2x128xf32> to vector<2x32xf32>
      %153 = math.tanh %152 : vector<2x32xf32>
      %154 = arith.mulf %150, %136 : vector<2x32xf32>
      %155 = arith.mulf %149, %153 : vector<2x32xf32>
      %156 = arith.addf %154, %155 : vector<2x32xf32>
      %157 = math.tanh %156 : vector<2x32xf32>
      %158 = arith.mulf %151, %157 : vector<2x32xf32>
      %159 = arith.index_cast %134 : i32 to index
      %c0_128 = arith.constant 0 : index
      %160 = vector.load %arg1[%159, %c0_128] : memref<16x32xf32, #tpu.memory_space<vmem>>, vector<2x32xf32>
      %161 = arith.mulf %160, %158 : vector<2x32xf32>
      %162 = arith.subf %158, %135 : vector<2x32xf32>
      %163 = arith.mulf %160, %162 : vector<2x32xf32>
      %164 = arith.addf %135, %163 : vector<2x32xf32>
      %c0_129 = arith.constant 0 : index
      %c0_130 = arith.constant 0 : index
      %165 = vector.load %arg11[%c0_129, %c0_130] : memref<2x32xf32, #tpu.memory_space<vmem>>, vector<2x32xf32>
      tpu.vector_store %arg11[%c0_129, %c0_130], %164 {strides = array<i32>} : memref<2x32xf32, #tpu.memory_space<vmem>>, vector<2x32xf32>,
      %166 = arith.subf %156, %136 : vector<2x32xf32>
      %167 = arith.mulf %160, %166 : vector<2x32xf32>
      %168 = arith.addf %136, %167 : vector<2x32xf32>
      %c0_131 = arith.constant 0 : index
      %c0_132 = arith.constant 0 : index
      %169 = vector.load %arg12[%c0_131, %c0_132] : memref<2x32xf32, #tpu.memory_space<vmem>>, vector<2x32xf32>
      tpu.vector_store %arg12[%c0_131, %c0_132], %168 {strides = array<i32>} : memref<2x32xf32, #tpu.memory_space<vmem>>, vector<2x32xf32>,
      %170 = arith.index_cast %134 : i32 to index
      %c0_133 = arith.constant 0 : index
      %171 = vector.load %arg14[%170, %c0_133] : memref<16x32xf32, #tpu.memory_space<vmem>>, vector<2x32xf32>
      tpu.vector_store %arg14[%170, %c0_133], %161 {strides = array<i32>} : memref<16x32xf32, #tpu.memory_space<vmem>>, vector<2x32xf32>,
    }
    %21 = arith.extui %4 : i1 to i32
    %c0_i32_22 = arith.constant 0 : i32
    %22 = arith.cmpi ne, %21, %c0_i32_22 : i32
    scf.if %22 {
      %c1_i32_99 = arith.constant 1 : i32
      %90 = arith.subi %0, %c1_i32_99 : i32
      %c2_i32 = arith.constant 2 : i32
      %91 = arith.muli %90, %c2_i32 : i32
      %92 = tpu.assume_multiple %91, 2 : i32
      %c0_100 = arith.constant 0 : index
      %c0_101 = arith.constant 0 : index
      %93 = vector.load %arg11[%c0_100, %c0_101] : memref<2x32xf32, #tpu.memory_space<vmem>>, vector<2x32xf32>
      %c0_102 = arith.constant 0 : index
      %c0_103 = arith.constant 0 : index
      %94 = vector.load %arg12[%c0_102, %c0_103] : memref<2x32xf32, #tpu.memory_space<vmem>>, vector<2x32xf32>
      %95 = arith.index_cast %92 : i32 to index
      %c0_104 = arith.constant 0 : index
      %96 = vector.load %arg10[%95, %c0_104] : memref<16x128xf32, #tpu.memory_space<vmem>>, vector<2x128xf32>
      %c0_105 = arith.constant 0 : index
      %c0_106 = arith.constant 0 : index
      %c0_107 = arith.constant 0 : index
      %97 = vector.load %arg4[%c0_105, %c0_106, %c0_107] : memref<2x32x128xf32, #tpu.memory_space<vmem>>, vector<1x32x128xf32>
      %98 = vector.shape_cast %97 : vector<1x32x128xf32> to vector<32x128xf32>
      %cst_108 = arith.constant dense<0.000000e+00> : vector<2x128xf32>
      %99 = tpu.matmul %93, %98, %cst_108 {dimension_numbers = #tpu.dot_dimension_numbers<[1], [0], [0], [1], [0, 0, 1, 1], [], []>} : vector<2x32xf32>, vector<32x128xf32>, vector<2x128xf32> -> vector<2x128xf32>
      %100 = arith.addf %96, %99 : vector<2x128xf32>
      %101 = vector.extract_strided_slice %100 {offsets = [0, 0], sizes = [2, 96], strides = [1, 1]} : vector<2x128xf32> to vector<2x96xf32>
      %102 = arith.negf %101 : vector<2x96xf32>
      %103 = math.exp %102 : vector<2x96xf32>
      %cst_109 = arith.constant 1.000000e+00 : f32
      %104 = vector.broadcast %cst_109 : f32 to vector<2x96xf32>
      %105 = arith.addf %104, %103 : vector<2x96xf32>
      %106 = arith.divf %104, %105 : vector<2x96xf32>
      %107 = vector.extract_strided_slice %106 {offsets = [0, 0], sizes = [2, 32], strides = [1, 1]} : vector<2x96xf32> to vector<2x32xf32>
      %108 = vector.extract_strided_slice %106 {offsets = [0, 32], sizes = [2, 32], strides = [1, 1]} : vector<2x96xf32> to vector<2x32xf32>
      %109 = vector.extract_strided_slice %106 {offsets = [0, 64], sizes = [2, 32], strides = [1, 1]} : vector<2x96xf32> to vector<2x32xf32>
      %110 = vector.extract_strided_slice %100 {offsets = [0, 96], sizes = [2, 32], strides = [1, 1]} : vector<2x128xf32> to vector<2x32xf32>
      %111 = math.tanh %110 : vector<2x32xf32>
      %112 = arith.mulf %108, %94 : vector<2x32xf32>
      %113 = arith.mulf %107, %111 : vector<2x32xf32>
      %114 = arith.addf %112, %113 : vector<2x32xf32>
      %115 = math.tanh %114 : vector<2x32xf32>
      %116 = arith.mulf %109, %115 : vector<2x32xf32>
      %117 = arith.index_cast %92 : i32 to index
      %c0_110 = arith.constant 0 : index
      %118 = vector.load %arg1[%117, %c0_110] : memref<16x32xf32, #tpu.memory_space<vmem>>, vector<2x32xf32>
      %119 = arith.mulf %118, %116 : vector<2x32xf32>
      %120 = arith.subf %116, %93 : vector<2x32xf32>
      %121 = arith.mulf %118, %120 : vector<2x32xf32>
      %122 = arith.addf %93, %121 : vector<2x32xf32>
      %c0_111 = arith.constant 0 : index
      %c0_112 = arith.constant 0 : index
      %123 = vector.load %arg11[%c0_111, %c0_112] : memref<2x32xf32, #tpu.memory_space<vmem>>, vector<2x32xf32>
      tpu.vector_store %arg11[%c0_111, %c0_112], %122 {strides = array<i32>} : memref<2x32xf32, #tpu.memory_space<vmem>>, vector<2x32xf32>,
      %124 = arith.subf %114, %94 : vector<2x32xf32>
      %125 = arith.mulf %118, %124 : vector<2x32xf32>
      %126 = arith.addf %94, %125 : vector<2x32xf32>
      %c0_113 = arith.constant 0 : index
      %c0_114 = arith.constant 0 : index
      %127 = vector.load %arg12[%c0_113, %c0_114] : memref<2x32xf32, #tpu.memory_space<vmem>>, vector<2x32xf32>
      tpu.vector_store %arg12[%c0_113, %c0_114], %126 {strides = array<i32>} : memref<2x32xf32, #tpu.memory_space<vmem>>, vector<2x32xf32>,
      %128 = arith.index_cast %92 : i32 to index
      %c0_115 = arith.constant 0 : index
      %129 = vector.load %arg14[%128, %c0_115] : memref<16x32xf32, #tpu.memory_space<vmem>>, vector<2x32xf32>
      tpu.vector_store %arg14[%128, %c0_115], %119 {strides = array<i32>} : memref<16x32xf32, #tpu.memory_space<vmem>>, vector<2x32xf32>,
    } else {
    }
    %c8_i32 = arith.constant 8 : i32
    %23 = arith.subi %c8_i32, %0 : i32
    %c1_i32_23 = arith.constant 1 : i32
    %c1_i32_24 = arith.constant 1 : i32
    %24 = arith.subi %c1_i32_23, %c1_i32_24 : i32
    %25 = arith.addi %23, %24 : i32
    %c1_i32_25 = arith.constant 1 : i32
    %26 = arith.divsi %25, %c1_i32_25 : i32
    %c1_i32_26 = arith.constant 1 : i32
    %c0_i32_27 = arith.constant 0 : i32
    %27 = arith.subi %26, %c0_i32_27 : i32
    %28 = arith.addi %c0_i32_27, %27 : i32
    %c1_i32_28 = arith.constant 1 : i32
    scf.for %arg15 = %c0_i32_27 to %28 step %c1_i32_28  : i32 {
      %90 = arith.muli %arg15, %c1_i32_26 : i32
      %91 = arith.addi %0, %90 : i32
      %cst_99 = arith.constant 0.000000e+00 : f32
      %92 = vector.broadcast %cst_99 : f32 to vector<2x32xf32>
      %c2_i32 = arith.constant 2 : i32
      %93 = arith.muli %91, %c2_i32 : i32
      %94 = arith.index_cast %93 : i32 to index
      %c0_100 = arith.constant 0 : index
      %95 = vector.load %arg14[%94, %c0_100] : memref<16x32xf32, #tpu.memory_space<vmem>>, vector<2x32xf32>
      tpu.vector_store %arg14[%94, %c0_100], %92 {strides = array<i32>} : memref<16x32xf32, #tpu.memory_space<vmem>>, vector<2x32xf32>,
    }
    %c0_29 = arith.constant 0 : index
    %c0_30 = arith.constant 0 : index
    %29 = vector.load %arg11[%c0_29, %c0_30] : memref<2x32xf32, #tpu.memory_space<vmem>>, vector<2x32xf32>
    %c0_31 = arith.constant 0 : index
    %c0_32 = arith.constant 0 : index
    %30 = vector.load %arg13[%c0_31, %c0_32] : memref<8x32xf32, #tpu.memory_space<vmem>>, vector<2x32xf32>
    tpu.vector_store %arg13[%c0_31, %c0_32], %29 {strides = array<i32>} : memref<8x32xf32, #tpu.memory_space<vmem>>, vector<2x32xf32>,
    %c0_33 = arith.constant 0 : index
    %c0_34 = arith.constant 0 : index
    %31 = vector.load %arg12[%c0_33, %c0_34] : memref<2x32xf32, #tpu.memory_space<vmem>>, vector<2x32xf32>
    %c4 = arith.constant 4 : index
    %c0_35 = arith.constant 0 : index
    %32 = vector.load %arg13[%c4, %c0_35] : memref<8x32xf32, #tpu.memory_space<vmem>>, vector<2x32xf32>
    tpu.vector_store %arg13[%c4, %c0_35], %31 {strides = array<i32>} : memref<8x32xf32, #tpu.memory_space<vmem>>, vector<2x32xf32>,
    %c0_i32_36 = arith.constant 0 : i32
    %33 = arith.subi %1, %c0_i32_36 : i32
    %c1_i32_37 = arith.constant 1 : i32
    %c1_i32_38 = arith.constant 1 : i32
    %34 = arith.subi %c1_i32_37, %c1_i32_38 : i32
    %35 = arith.addi %33, %34 : i32
    %c1_i32_39 = arith.constant 1 : i32
    %36 = arith.divsi %35, %c1_i32_39 : i32
    %c1_i32_40 = arith.constant 1 : i32
    %c0_i32_41 = arith.constant 0 : i32
    %c0_i32_42 = arith.constant 0 : i32
    %37 = arith.subi %36, %c0_i32_42 : i32
    %38 = arith.addi %c0_i32_42, %37 : i32
    %c1_i32_43 = arith.constant 1 : i32
    scf.for %arg15 = %c0_i32_42 to %38 step %c1_i32_43  : i32 {
      %90 = arith.muli %arg15, %c1_i32_40 : i32
      %91 = arith.addi %c0_i32_41, %90 : i32
      %c16_i32 = arith.constant 16 : i32
      %92 = arith.muli %91, %c16_i32 : i32
      %93 = tpu.assume_multiple %92, 16 : i32
      %94 = arith.index_cast %93 : i32 to index
      %c0_99 = arith.constant 0 : index
      %95 = vector.load %arg14[%94, %c0_99] : memref<16x32xf32, #tpu.memory_space<vmem>>, vector<16x32xf32>
      %c1_100 = arith.constant 1 : index
      %c0_101 = arith.constant 0 : index
      %c0_102 = arith.constant 0 : index
      %96 = vector.load %arg3[%c1_100, %c0_101, %c0_102] : memref<2x32x128xf32, #tpu.memory_space<vmem>>, vector<1x32x128xf32>
      %97 = vector.shape_cast %96 : vector<1x32x128xf32> to vector<32x128xf32>
      %cst_103 = arith.constant dense<0.000000e+00> : vector<16x128xf32>
      %98 = tpu.matmul %95, %97, %cst_103 {dimension_numbers = #tpu.dot_dimension_numbers<[1], [0], [0], [1], [0, 0, 1, 1], [], []>} : vector<16x32xf32>, vector<32x128xf32>, vector<16x128xf32> -> vector<16x128xf32>
      %c1_104 = arith.constant 1 : index
      %c0_105 = arith.constant 0 : index
      %c0_106 = arith.constant 0 : index
      %99 = vector.load %arg5[%c1_104, %c0_105, %c0_106] : memref<2x1x128xf32, #tpu.memory_space<vmem>>, vector<1x1x128xf32>
      %100 = vector.shape_cast %99 : vector<1x1x128xf32> to vector<1x128xf32>
      %101 = vector.broadcast %100 : vector<1x128xf32> to vector<16x128xf32>
      %102 = arith.addf %98, %101 : vector<16x128xf32>
      %103 = arith.index_cast %93 : i32 to index
      %c0_107 = arith.constant 0 : index
      %104 = vector.load %arg10[%103, %c0_107] : memref<16x128xf32, #tpu.memory_space<vmem>>, vector<16x128xf32>
      tpu.vector_store %arg10[%103, %c0_107], %102 {strides = array<i32>} : memref<16x128xf32, #tpu.memory_space<vmem>>, vector<16x128xf32>,
    }
    %cst_44 = arith.constant 0.000000e+00 : f32
    %39 = vector.broadcast %cst_44 : f32 to vector<2x32xf32>
    %c0_45 = arith.constant 0 : index
    %c0_46 = arith.constant 0 : index
    %40 = vector.load %arg11[%c0_45, %c0_46] : memref<2x32xf32, #tpu.memory_space<vmem>>, vector<2x32xf32>
    tpu.vector_store %arg11[%c0_45, %c0_46], %39 {strides = array<i32>} : memref<2x32xf32, #tpu.memory_space<vmem>>, vector<2x32xf32>,
    %cst_47 = arith.constant 0.000000e+00 : f32
    %41 = vector.broadcast %cst_47 : f32 to vector<2x32xf32>
    %c0_48 = arith.constant 0 : index
    %c0_49 = arith.constant 0 : index
    %42 = vector.load %arg12[%c0_48, %c0_49] : memref<2x32xf32, #tpu.memory_space<vmem>>, vector<2x32xf32>
    tpu.vector_store %arg12[%c0_48, %c0_49], %41 {strides = array<i32>} : memref<2x32xf32, #tpu.memory_space<vmem>>, vector<2x32xf32>,
    %c0_i32_50 = arith.constant 0 : i32
    %43 = arith.subi %2, %c0_i32_50 : i32
    %c1_i32_51 = arith.constant 1 : i32
    %c1_i32_52 = arith.constant 1 : i32
    %44 = arith.subi %c1_i32_51, %c1_i32_52 : i32
    %45 = arith.addi %43, %44 : i32
    %c1_i32_53 = arith.constant 1 : i32
    %46 = arith.divsi %45, %c1_i32_53 : i32
    %c1_i32_54 = arith.constant 1 : i32
    %c0_i32_55 = arith.constant 0 : i32
    %c0_i32_56 = arith.constant 0 : i32
    %47 = arith.subi %46, %c0_i32_56 : i32
    %48 = arith.addi %c0_i32_56, %47 : i32
    %c1_i32_57 = arith.constant 1 : i32
    scf.for %arg15 = %c0_i32_56 to %48 step %c1_i32_57  : i32 {
      %90 = arith.muli %arg15, %c1_i32_54 : i32
      %91 = arith.addi %c0_i32_55, %90 : i32
      %c2_i32 = arith.constant 2 : i32
      %92 = arith.muli %c2_i32, %91 : i32
      %c2_i32_99 = arith.constant 2 : i32
      %93 = arith.muli %92, %c2_i32_99 : i32
      %94 = tpu.assume_multiple %93, 2 : i32
      %c0_100 = arith.constant 0 : index
      %c0_101 = arith.constant 0 : index
      %95 = vector.load %arg11[%c0_100, %c0_101] : memref<2x32xf32, #tpu.memory_space<vmem>>, vector<2x32xf32>
      %c0_102 = arith.constant 0 : index
      %c0_103 = arith.constant 0 : index
      %96 = vector.load %arg12[%c0_102, %c0_103] : memref<2x32xf32, #tpu.memory_space<vmem>>, vector<2x32xf32>
      %97 = arith.index_cast %94 : i32 to index
      %c0_104 = arith.constant 0 : index
      %98 = vector.load %arg10[%97, %c0_104] : memref<16x128xf32, #tpu.memory_space<vmem>>, vector<2x128xf32>
      %c1_105 = arith.constant 1 : index
      %c0_106 = arith.constant 0 : index
      %c0_107 = arith.constant 0 : index
      %99 = vector.load %arg4[%c1_105, %c0_106, %c0_107] : memref<2x32x128xf32, #tpu.memory_space<vmem>>, vector<1x32x128xf32>
      %100 = vector.shape_cast %99 : vector<1x32x128xf32> to vector<32x128xf32>
      %cst_108 = arith.constant dense<0.000000e+00> : vector<2x128xf32>
      %101 = tpu.matmul %95, %100, %cst_108 {dimension_numbers = #tpu.dot_dimension_numbers<[1], [0], [0], [1], [0, 0, 1, 1], [], []>} : vector<2x32xf32>, vector<32x128xf32>, vector<2x128xf32> -> vector<2x128xf32>
      %102 = arith.addf %98, %101 : vector<2x128xf32>
      %103 = vector.extract_strided_slice %102 {offsets = [0, 0], sizes = [2, 96], strides = [1, 1]} : vector<2x128xf32> to vector<2x96xf32>
      %104 = arith.negf %103 : vector<2x96xf32>
      %105 = math.exp %104 : vector<2x96xf32>
      %cst_109 = arith.constant 1.000000e+00 : f32
      %106 = vector.broadcast %cst_109 : f32 to vector<2x96xf32>
      %107 = arith.addf %106, %105 : vector<2x96xf32>
      %108 = arith.divf %106, %107 : vector<2x96xf32>
      %109 = vector.extract_strided_slice %108 {offsets = [0, 0], sizes = [2, 32], strides = [1, 1]} : vector<2x96xf32> to vector<2x32xf32>
      %110 = vector.extract_strided_slice %108 {offsets = [0, 32], sizes = [2, 32], strides = [1, 1]} : vector<2x96xf32> to vector<2x32xf32>
      %111 = vector.extract_strided_slice %108 {offsets = [0, 64], sizes = [2, 32], strides = [1, 1]} : vector<2x96xf32> to vector<2x32xf32>
      %112 = vector.extract_strided_slice %102 {offsets = [0, 96], sizes = [2, 32], strides = [1, 1]} : vector<2x128xf32> to vector<2x32xf32>
      %113 = math.tanh %112 : vector<2x32xf32>
      %114 = arith.mulf %110, %96 : vector<2x32xf32>
      %115 = arith.mulf %109, %113 : vector<2x32xf32>
      %116 = arith.addf %114, %115 : vector<2x32xf32>
      %117 = math.tanh %116 : vector<2x32xf32>
      %118 = arith.mulf %111, %117 : vector<2x32xf32>
      %119 = arith.index_cast %94 : i32 to index
      %c0_110 = arith.constant 0 : index
      %120 = vector.load %arg1[%119, %c0_110] : memref<16x32xf32, #tpu.memory_space<vmem>>, vector<2x32xf32>
      %121 = arith.mulf %120, %118 : vector<2x32xf32>
      %122 = arith.subf %118, %95 : vector<2x32xf32>
      %123 = arith.mulf %120, %122 : vector<2x32xf32>
      %124 = arith.addf %95, %123 : vector<2x32xf32>
      %c0_111 = arith.constant 0 : index
      %c0_112 = arith.constant 0 : index
      %125 = vector.load %arg11[%c0_111, %c0_112] : memref<2x32xf32, #tpu.memory_space<vmem>>, vector<2x32xf32>
      tpu.vector_store %arg11[%c0_111, %c0_112], %124 {strides = array<i32>} : memref<2x32xf32, #tpu.memory_space<vmem>>, vector<2x32xf32>,
      %126 = arith.subf %116, %96 : vector<2x32xf32>
      %127 = arith.mulf %120, %126 : vector<2x32xf32>
      %128 = arith.addf %96, %127 : vector<2x32xf32>
      %c0_113 = arith.constant 0 : index
      %c0_114 = arith.constant 0 : index
      %129 = vector.load %arg12[%c0_113, %c0_114] : memref<2x32xf32, #tpu.memory_space<vmem>>, vector<2x32xf32>
      tpu.vector_store %arg12[%c0_113, %c0_114], %128 {strides = array<i32>} : memref<2x32xf32, #tpu.memory_space<vmem>>, vector<2x32xf32>,
      %130 = arith.index_cast %94 : i32 to index
      %c0_115 = arith.constant 0 : index
      %131 = vector.load %arg8[%130, %c0_115] : memref<16x32xf32, #tpu.memory_space<vmem>>, vector<2x32xf32>
      tpu.vector_store %arg8[%130, %c0_115], %121 {strides = array<i32>} : memref<16x32xf32, #tpu.memory_space<vmem>>, vector<2x32xf32>,
      %c1_i32_116 = arith.constant 1 : i32
      %132 = arith.addi %92, %c1_i32_116 : i32
      %c2_i32_117 = arith.constant 2 : i32
      %133 = arith.muli %132, %c2_i32_117 : i32
      %134 = tpu.assume_multiple %133, 2 : i32
      %c0_118 = arith.constant 0 : index
      %c0_119 = arith.constant 0 : index
      %135 = vector.load %arg11[%c0_118, %c0_119] : memref<2x32xf32, #tpu.memory_space<vmem>>, vector<2x32xf32>
      %c0_120 = arith.constant 0 : index
      %c0_121 = arith.constant 0 : index
      %136 = vector.load %arg12[%c0_120, %c0_121] : memref<2x32xf32, #tpu.memory_space<vmem>>, vector<2x32xf32>
      %137 = arith.index_cast %134 : i32 to index
      %c0_122 = arith.constant 0 : index
      %138 = vector.load %arg10[%137, %c0_122] : memref<16x128xf32, #tpu.memory_space<vmem>>, vector<2x128xf32>
      %c1_123 = arith.constant 1 : index
      %c0_124 = arith.constant 0 : index
      %c0_125 = arith.constant 0 : index
      %139 = vector.load %arg4[%c1_123, %c0_124, %c0_125] : memref<2x32x128xf32, #tpu.memory_space<vmem>>, vector<1x32x128xf32>
      %140 = vector.shape_cast %139 : vector<1x32x128xf32> to vector<32x128xf32>
      %cst_126 = arith.constant dense<0.000000e+00> : vector<2x128xf32>
      %141 = tpu.matmul %135, %140, %cst_126 {dimension_numbers = #tpu.dot_dimension_numbers<[1], [0], [0], [1], [0, 0, 1, 1], [], []>} : vector<2x32xf32>, vector<32x128xf32>, vector<2x128xf32> -> vector<2x128xf32>
      %142 = arith.addf %138, %141 : vector<2x128xf32>
      %143 = vector.extract_strided_slice %142 {offsets = [0, 0], sizes = [2, 96], strides = [1, 1]} : vector<2x128xf32> to vector<2x96xf32>
      %144 = arith.negf %143 : vector<2x96xf32>
      %145 = math.exp %144 : vector<2x96xf32>
      %cst_127 = arith.constant 1.000000e+00 : f32
      %146 = vector.broadcast %cst_127 : f32 to vector<2x96xf32>
      %147 = arith.addf %146, %145 : vector<2x96xf32>
      %148 = arith.divf %146, %147 : vector<2x96xf32>
      %149 = vector.extract_strided_slice %148 {offsets = [0, 0], sizes = [2, 32], strides = [1, 1]} : vector<2x96xf32> to vector<2x32xf32>
      %150 = vector.extract_strided_slice %148 {offsets = [0, 32], sizes = [2, 32], strides = [1, 1]} : vector<2x96xf32> to vector<2x32xf32>
      %151 = vector.extract_strided_slice %148 {offsets = [0, 64], sizes = [2, 32], strides = [1, 1]} : vector<2x96xf32> to vector<2x32xf32>
      %152 = vector.extract_strided_slice %142 {offsets = [0, 96], sizes = [2, 32], strides = [1, 1]} : vector<2x128xf32> to vector<2x32xf32>
      %153 = math.tanh %152 : vector<2x32xf32>
      %154 = arith.mulf %150, %136 : vector<2x32xf32>
      %155 = arith.mulf %149, %153 : vector<2x32xf32>
      %156 = arith.addf %154, %155 : vector<2x32xf32>
      %157 = math.tanh %156 : vector<2x32xf32>
      %158 = arith.mulf %151, %157 : vector<2x32xf32>
      %159 = arith.index_cast %134 : i32 to index
      %c0_128 = arith.constant 0 : index
      %160 = vector.load %arg1[%159, %c0_128] : memref<16x32xf32, #tpu.memory_space<vmem>>, vector<2x32xf32>
      %161 = arith.mulf %160, %158 : vector<2x32xf32>
      %162 = arith.subf %158, %135 : vector<2x32xf32>
      %163 = arith.mulf %160, %162 : vector<2x32xf32>
      %164 = arith.addf %135, %163 : vector<2x32xf32>
      %c0_129 = arith.constant 0 : index
      %c0_130 = arith.constant 0 : index
      %165 = vector.load %arg11[%c0_129, %c0_130] : memref<2x32xf32, #tpu.memory_space<vmem>>, vector<2x32xf32>
      tpu.vector_store %arg11[%c0_129, %c0_130], %164 {strides = array<i32>} : memref<2x32xf32, #tpu.memory_space<vmem>>, vector<2x32xf32>,
      %166 = arith.subf %156, %136 : vector<2x32xf32>
      %167 = arith.mulf %160, %166 : vector<2x32xf32>
      %168 = arith.addf %136, %167 : vector<2x32xf32>
      %c0_131 = arith.constant 0 : index
      %c0_132 = arith.constant 0 : index
      %169 = vector.load %arg12[%c0_131, %c0_132] : memref<2x32xf32, #tpu.memory_space<vmem>>, vector<2x32xf32>
      tpu.vector_store %arg12[%c0_131, %c0_132], %168 {strides = array<i32>} : memref<2x32xf32, #tpu.memory_space<vmem>>, vector<2x32xf32>,
      %170 = arith.index_cast %134 : i32 to index
      %c0_133 = arith.constant 0 : index
      %171 = vector.load %arg8[%170, %c0_133] : memref<16x32xf32, #tpu.memory_space<vmem>>, vector<2x32xf32>
      tpu.vector_store %arg8[%170, %c0_133], %161 {strides = array<i32>} : memref<16x32xf32, #tpu.memory_space<vmem>>, vector<2x32xf32>,
    }
    %49 = arith.extui %4 : i1 to i32
    %c0_i32_58 = arith.constant 0 : i32
    %50 = arith.cmpi ne, %49, %c0_i32_58 : i32
    scf.if %50 {
      %c1_i32_99 = arith.constant 1 : i32
      %90 = arith.subi %0, %c1_i32_99 : i32
      %c2_i32 = arith.constant 2 : i32
      %91 = arith.muli %90, %c2_i32 : i32
      %92 = tpu.assume_multiple %91, 2 : i32
      %c0_100 = arith.constant 0 : index
      %c0_101 = arith.constant 0 : index
      %93 = vector.load %arg11[%c0_100, %c0_101] : memref<2x32xf32, #tpu.memory_space<vmem>>, vector<2x32xf32>
      %c0_102 = arith.constant 0 : index
      %c0_103 = arith.constant 0 : index
      %94 = vector.load %arg12[%c0_102, %c0_103] : memref<2x32xf32, #tpu.memory_space<vmem>>, vector<2x32xf32>
      %95 = arith.index_cast %92 : i32 to index
      %c0_104 = arith.constant 0 : index
      %96 = vector.load %arg10[%95, %c0_104] : memref<16x128xf32, #tpu.memory_space<vmem>>, vector<2x128xf32>
      %c1_105 = arith.constant 1 : index
      %c0_106 = arith.constant 0 : index
      %c0_107 = arith.constant 0 : index
      %97 = vector.load %arg4[%c1_105, %c0_106, %c0_107] : memref<2x32x128xf32, #tpu.memory_space<vmem>>, vector<1x32x128xf32>
      %98 = vector.shape_cast %97 : vector<1x32x128xf32> to vector<32x128xf32>
      %cst_108 = arith.constant dense<0.000000e+00> : vector<2x128xf32>
      %99 = tpu.matmul %93, %98, %cst_108 {dimension_numbers = #tpu.dot_dimension_numbers<[1], [0], [0], [1], [0, 0, 1, 1], [], []>} : vector<2x32xf32>, vector<32x128xf32>, vector<2x128xf32> -> vector<2x128xf32>
      %100 = arith.addf %96, %99 : vector<2x128xf32>
      %101 = vector.extract_strided_slice %100 {offsets = [0, 0], sizes = [2, 96], strides = [1, 1]} : vector<2x128xf32> to vector<2x96xf32>
      %102 = arith.negf %101 : vector<2x96xf32>
      %103 = math.exp %102 : vector<2x96xf32>
      %cst_109 = arith.constant 1.000000e+00 : f32
      %104 = vector.broadcast %cst_109 : f32 to vector<2x96xf32>
      %105 = arith.addf %104, %103 : vector<2x96xf32>
      %106 = arith.divf %104, %105 : vector<2x96xf32>
      %107 = vector.extract_strided_slice %106 {offsets = [0, 0], sizes = [2, 32], strides = [1, 1]} : vector<2x96xf32> to vector<2x32xf32>
      %108 = vector.extract_strided_slice %106 {offsets = [0, 32], sizes = [2, 32], strides = [1, 1]} : vector<2x96xf32> to vector<2x32xf32>
      %109 = vector.extract_strided_slice %106 {offsets = [0, 64], sizes = [2, 32], strides = [1, 1]} : vector<2x96xf32> to vector<2x32xf32>
      %110 = vector.extract_strided_slice %100 {offsets = [0, 96], sizes = [2, 32], strides = [1, 1]} : vector<2x128xf32> to vector<2x32xf32>
      %111 = math.tanh %110 : vector<2x32xf32>
      %112 = arith.mulf %108, %94 : vector<2x32xf32>
      %113 = arith.mulf %107, %111 : vector<2x32xf32>
      %114 = arith.addf %112, %113 : vector<2x32xf32>
      %115 = math.tanh %114 : vector<2x32xf32>
      %116 = arith.mulf %109, %115 : vector<2x32xf32>
      %117 = arith.index_cast %92 : i32 to index
      %c0_110 = arith.constant 0 : index
      %118 = vector.load %arg1[%117, %c0_110] : memref<16x32xf32, #tpu.memory_space<vmem>>, vector<2x32xf32>
      %119 = arith.mulf %118, %116 : vector<2x32xf32>
      %120 = arith.subf %116, %93 : vector<2x32xf32>
      %121 = arith.mulf %118, %120 : vector<2x32xf32>
      %122 = arith.addf %93, %121 : vector<2x32xf32>
      %c0_111 = arith.constant 0 : index
      %c0_112 = arith.constant 0 : index
      %123 = vector.load %arg11[%c0_111, %c0_112] : memref<2x32xf32, #tpu.memory_space<vmem>>, vector<2x32xf32>
      tpu.vector_store %arg11[%c0_111, %c0_112], %122 {strides = array<i32>} : memref<2x32xf32, #tpu.memory_space<vmem>>, vector<2x32xf32>,
      %124 = arith.subf %114, %94 : vector<2x32xf32>
      %125 = arith.mulf %118, %124 : vector<2x32xf32>
      %126 = arith.addf %94, %125 : vector<2x32xf32>
      %c0_113 = arith.constant 0 : index
      %c0_114 = arith.constant 0 : index
      %127 = vector.load %arg12[%c0_113, %c0_114] : memref<2x32xf32, #tpu.memory_space<vmem>>, vector<2x32xf32>
      tpu.vector_store %arg12[%c0_113, %c0_114], %126 {strides = array<i32>} : memref<2x32xf32, #tpu.memory_space<vmem>>, vector<2x32xf32>,
      %128 = arith.index_cast %92 : i32 to index
      %c0_115 = arith.constant 0 : index
      %129 = vector.load %arg8[%128, %c0_115] : memref<16x32xf32, #tpu.memory_space<vmem>>, vector<2x32xf32>
      tpu.vector_store %arg8[%128, %c0_115], %119 {strides = array<i32>} : memref<16x32xf32, #tpu.memory_space<vmem>>, vector<2x32xf32>,
    } else {
    }
    %c8_i32_59 = arith.constant 8 : i32
    %51 = arith.subi %c8_i32_59, %0 : i32
    %c1_i32_60 = arith.constant 1 : i32
    %c1_i32_61 = arith.constant 1 : i32
    %52 = arith.subi %c1_i32_60, %c1_i32_61 : i32
    %53 = arith.addi %51, %52 : i32
    %c1_i32_62 = arith.constant 1 : i32
    %54 = arith.divsi %53, %c1_i32_62 : i32
    %c1_i32_63 = arith.constant 1 : i32
    %c0_i32_64 = arith.constant 0 : i32
    %55 = arith.subi %54, %c0_i32_64 : i32
    %56 = arith.addi %c0_i32_64, %55 : i32
    %c1_i32_65 = arith.constant 1 : i32
    scf.for %arg15 = %c0_i32_64 to %56 step %c1_i32_65  : i32 {
      %90 = arith.muli %arg15, %c1_i32_63 : i32
      %91 = arith.addi %0, %90 : i32
      %cst_99 = arith.constant 0.000000e+00 : f32
      %92 = vector.broadcast %cst_99 : f32 to vector<2x32xf32>
      %c2_i32 = arith.constant 2 : i32
      %93 = arith.muli %91, %c2_i32 : i32
      %94 = arith.index_cast %93 : i32 to index
      %c0_100 = arith.constant 0 : index
      %95 = vector.load %arg8[%94, %c0_100] : memref<16x32xf32, #tpu.memory_space<vmem>>, vector<2x32xf32>
      tpu.vector_store %arg8[%94, %c0_100], %92 {strides = array<i32>} : memref<16x32xf32, #tpu.memory_space<vmem>>, vector<2x32xf32>,
    }
    %c0_66 = arith.constant 0 : index
    %c0_67 = arith.constant 0 : index
    %57 = vector.load %arg11[%c0_66, %c0_67] : memref<2x32xf32, #tpu.memory_space<vmem>>, vector<2x32xf32>
    %c2 = arith.constant 2 : index
    %c0_68 = arith.constant 0 : index
    %58 = vector.load %arg13[%c2, %c0_68] : memref<8x32xf32, #tpu.memory_space<vmem>>, vector<2x32xf32>
    tpu.vector_store %arg13[%c2, %c0_68], %57 {strides = array<i32>} : memref<8x32xf32, #tpu.memory_space<vmem>>, vector<2x32xf32>,
    %c0_69 = arith.constant 0 : index
    %c0_70 = arith.constant 0 : index
    %59 = vector.load %arg12[%c0_69, %c0_70] : memref<2x32xf32, #tpu.memory_space<vmem>>, vector<2x32xf32>
    %c6 = arith.constant 6 : index
    %c0_71 = arith.constant 0 : index
    %60 = vector.load %arg13[%c6, %c0_71] : memref<8x32xf32, #tpu.memory_space<vmem>>, vector<2x32xf32>
    tpu.vector_store %arg13[%c6, %c0_71], %59 {strides = array<i32>} : memref<8x32xf32, #tpu.memory_space<vmem>>, vector<2x32xf32>,
    %cst_72 = arith.constant 0.000000e+00 : f32
    %61 = vector.broadcast %cst_72 : f32 to vector<2x32xf32>
    %c0_73 = arith.constant 0 : index
    %c0_74 = arith.constant 0 : index
    %62 = vector.load %arg13[%c0_73, %c0_74] : memref<8x32xf32, #tpu.memory_space<vmem>>, vector<1x32xf32>
    %c4_75 = arith.constant 4 : index
    %c0_76 = arith.constant 0 : index
    %63 = vector.load %arg13[%c4_75, %c0_76] : memref<8x32xf32, #tpu.memory_space<vmem>>, vector<1x32xf32>
    %64 = tpu.concatenate %62, %63 in 0 : vector<1x32xf32>, vector<1x32xf32> -> vector<2x32xf32>
    %c0_77 = arith.constant 0 : index
    %c0_78 = arith.constant 0 : index
    %65 = vector.load %arg6[%c0_77, %c0_78] : memref<128x32xf32, #tpu.memory_space<vmem>>, vector<32x32xf32>
    %cst_79 = arith.constant dense<0.000000e+00> : vector<2x32xf32>
    %66 = tpu.matmul %64, %65, %cst_79 {dimension_numbers = #tpu.dot_dimension_numbers<[1], [0], [0], [1], [0, 0, 1, 1], [], []>} : vector<2x32xf32>, vector<32x32xf32>, vector<2x32xf32> -> vector<2x32xf32>
    %67 = arith.addf %61, %66 : vector<2x32xf32>
    %c1_80 = arith.constant 1 : index
    %c0_81 = arith.constant 0 : index
    %68 = vector.load %arg13[%c1_80, %c0_81] : memref<8x32xf32, #tpu.memory_space<vmem>>, vector<1x32xf32>
    %c5 = arith.constant 5 : index
    %c0_82 = arith.constant 0 : index
    %69 = vector.load %arg13[%c5, %c0_82] : memref<8x32xf32, #tpu.memory_space<vmem>>, vector<1x32xf32>
    %70 = tpu.concatenate %68, %69 in 0 : vector<1x32xf32>, vector<1x32xf32> -> vector<2x32xf32>
    %c32 = arith.constant 32 : index
    %c0_83 = arith.constant 0 : index
    %71 = vector.load %arg6[%c32, %c0_83] : memref<128x32xf32, #tpu.memory_space<vmem>>, vector<32x32xf32>
    %cst_84 = arith.constant dense<0.000000e+00> : vector<2x32xf32>
    %72 = tpu.matmul %70, %71, %cst_84 {dimension_numbers = #tpu.dot_dimension_numbers<[1], [0], [0], [1], [0, 0, 1, 1], [], []>} : vector<2x32xf32>, vector<32x32xf32>, vector<2x32xf32> -> vector<2x32xf32>
    %73 = arith.addf %67, %72 : vector<2x32xf32>
    %c2_85 = arith.constant 2 : index
    %c0_86 = arith.constant 0 : index
    %74 = vector.load %arg13[%c2_85, %c0_86] : memref<8x32xf32, #tpu.memory_space<vmem>>, vector<1x32xf32>
    %c6_87 = arith.constant 6 : index
    %c0_88 = arith.constant 0 : index
    %75 = vector.load %arg13[%c6_87, %c0_88] : memref<8x32xf32, #tpu.memory_space<vmem>>, vector<1x32xf32>
    %76 = tpu.concatenate %74, %75 in 0 : vector<1x32xf32>, vector<1x32xf32> -> vector<2x32xf32>
    %c64 = arith.constant 64 : index
    %c0_89 = arith.constant 0 : index
    %77 = vector.load %arg6[%c64, %c0_89] : memref<128x32xf32, #tpu.memory_space<vmem>>, vector<32x32xf32>
    %cst_90 = arith.constant dense<0.000000e+00> : vector<2x32xf32>
    %78 = tpu.matmul %76, %77, %cst_90 {dimension_numbers = #tpu.dot_dimension_numbers<[1], [0], [0], [1], [0, 0, 1, 1], [], []>} : vector<2x32xf32>, vector<32x32xf32>, vector<2x32xf32> -> vector<2x32xf32>
    %79 = arith.addf %73, %78 : vector<2x32xf32>
    %c3 = arith.constant 3 : index
    %c0_91 = arith.constant 0 : index
    %80 = vector.load %arg13[%c3, %c0_91] : memref<8x32xf32, #tpu.memory_space<vmem>>, vector<1x32xf32>
    %c7 = arith.constant 7 : index
    %c0_92 = arith.constant 0 : index
    %81 = vector.load %arg13[%c7, %c0_92] : memref<8x32xf32, #tpu.memory_space<vmem>>, vector<1x32xf32>
    %82 = tpu.concatenate %80, %81 in 0 : vector<1x32xf32>, vector<1x32xf32> -> vector<2x32xf32>
    %c96 = arith.constant 96 : index
    %c0_93 = arith.constant 0 : index
    %83 = vector.load %arg6[%c96, %c0_93] : memref<128x32xf32, #tpu.memory_space<vmem>>, vector<32x32xf32>
    %cst_94 = arith.constant dense<0.000000e+00> : vector<2x32xf32>
    %84 = tpu.matmul %82, %83, %cst_94 {dimension_numbers = #tpu.dot_dimension_numbers<[1], [0], [0], [1], [0, 0, 1, 1], [], []>} : vector<2x32xf32>, vector<32x32xf32>, vector<2x32xf32> -> vector<2x32xf32>
    %85 = arith.addf %79, %84 : vector<2x32xf32>
    %c0_95 = arith.constant 0 : index
    %c0_96 = arith.constant 0 : index
    %86 = vector.load %arg7[%c0_95, %c0_96] : memref<1x32xf32, #tpu.memory_space<vmem>>, vector<1x32xf32>
    %87 = vector.broadcast %86 : vector<1x32xf32> to vector<2x32xf32>
    %88 = arith.addf %85, %87 : vector<2x32xf32>
    %c0_97 = arith.constant 0 : index
    %c0_98 = arith.constant 0 : index
    %89 = vector.load %arg9[%c0_97, %c0_98] : memref<2x32xf32, #tpu.memory_space<vmem>>, vector<2x32xf32>
    tpu.vector_store %arg9[%c0_97, %c0_98], %88 {strides = array<i32>} : memref<2x32xf32, #tpu.memory_space<vmem>>, vector<2x32xf32>,
    return
  }
}

</mosaic_0001>

<llo_original>
// kernel: question_encoder_forward.1
$region0: #{question_encoder_forward.1}
  #allocation0 [shape = 'u32[]', space=smem, size = 0x4, offset = 0x4, fixed_abs, tag = 'smem constant byte address 0x4 - core index']
  #allocation1 [shape = 'u32[72,128]{1,0:T(1,128)}', space=vmem, size = 0x9000, scoped, tag = 'internal scratch']
  #allocation2 [shape = 'f32[16,128]{1,0:T(8,128)}', space=vmem, size = 0x2000, scoped, tag = 'scratch operand']
  #allocation3 [shape = 'f32[2,32]{1,0:T(2,128)}', space=vmem, size = 0x400, scoped, tag = 'scratch operand']
  #allocation4 [shape = 'f32[2,32]{1,0:T(2,128)}', space=vmem, size = 0x400, scoped, tag = 'scratch operand']
  #allocation5 [shape = 'f32[8,32]{1,0:T(8,128)}', space=vmem, size = 0x1000, scoped, tag = 'scratch operand']
  #allocation6 [shape = 'f32[16,32]{1,0:T(8,128)}', space=vmem, size = 0x2000, scoped, tag = 'scratch operand']
  %s0 = inlined_call_operand.vmem [shape: s32[2], index: 0, kind: input, shape index: {}]
  %s1 = inlined_call_operand.vmem [shape: f32[16,32], index: 1, kind: input, shape index: {}]
  %s2 = inlined_call_operand.vmem [shape: f32[16,32], index: 2, kind: input, shape index: {}]
  %s3 = inlined_call_operand.vmem [shape: f32[2,32,128], index: 3, kind: input, shape index: {}]
  %s4 = inlined_call_operand.vmem [shape: f32[2,32,128], index: 4, kind: input, shape index: {}]
  %s5 = inlined_call_operand.vmem [shape: f32[2,1,128], index: 5, kind: input, shape index: {}]
  %s6 = inlined_call_operand.vmem [shape: f32[128,32], index: 6, kind: input, shape index: {}]
  %s7 = inlined_call_operand.vmem [shape: f32[1,32], index: 7, kind: input, shape index: {}]
  %s8 = inlined_call_operand.vmem [shape: f32[16,32], index: 8, kind: output, shape index: {0}]
  %s9 = inlined_call_operand.hbm [shape: f32[2,32], index: 9, kind: output, shape index: {1}]
  %10 = xla_tuple %s8, %s9
  %s11 = sld [smem:[#allocation0]]
  $region104: #{question_encoder_forward.1} parent=0
    _
  %s13 = ssub.s32 1, %s11
  %s14 = scalar_select 0, %s13, %s11
  $region1: #{question_encoder_forward.1} parent=0
    #allocation7 [shape = 'u8[512]{0}', space=smem, size = 0x200, scoped, tag = 'input window, operand 0, single buffered']
    #allocation8 [shape = 's32[1]{0}', space=sflag, size = 0x4, scoped, tag = 'scoped memory for question_encoder_forward.1']
    #allocation9 [shape = 's32[1]{0}', space=sflag, size = 0x4, scoped, tag = 'scoped memory for question_encoder_forward.1']
    #allocation10 [shape = 'u8[1024]{0}', space=vmem, size = 0x400, scoped, tag = 'output window, operand 1, single buffered']
    %15 = vsyncpa [#allocation9], 0
    %16 = vsyncpa [#allocation8], 0
    // Predicated region
    $region2: #{question_encoder_forward.1} parent=1 // pred_check
      _
    $region3: #{question_encoder_forward.1} parent=1 // pred_check_branch
      %18 = sbr.rel (0) target = $region5
    $region4: #{question_encoder_forward.1} parent=1 // pred_region
      %20 = vsyncadd [#allocation9], 0
      %s22 = sshll.u32 %s0, 4
      %s23 = int_to_ptr.vmem [resolvable:$true] %s22
      %25 = dma.vmem_to_smem %s23, 16, [#allocation7], [#allocation9]
    $region5: #{question_encoder_forward.1} parent=1 // pred_fallthru
      _
    // Predicated region
    $region6: #{question_encoder_forward.1} parent=1 // pred_check
      _
    $region7: #{question_encoder_forward.1} parent=1 // pred_check_branch
      %27 = sbr.rel (0) target = $region9
    $region8: #{question_encoder_forward.1} parent=1 // pred_region
      _
    $region9: #{question_encoder_forward.1} parent=1 // pred_fallthru
      _
    // Predicated region
    $region10: #{question_encoder_forward.1} parent=1 // pred_check
      _
    $region11: #{question_encoder_forward.1} parent=1 // pred_check_branch
      %29 = sbr.rel (0) target = $region13
    $region12: #{question_encoder_forward.1} parent=1 // pred_region
      _
    $region13: #{question_encoder_forward.1} parent=1 // pred_fallthru
      _
    // Predicated region
    $region14: #{question_encoder_forward.1} parent=1 // pred_check
      _
    $region15: #{question_encoder_forward.1} parent=1 // pred_check_branch
      %31 = sbr.rel (0) target = $region17
    $region16: #{question_encoder_forward.1} parent=1 // pred_region
      _
    $region17: #{question_encoder_forward.1} parent=1 // pred_fallthru
      _
    // Predicated region
    $region18: #{question_encoder_forward.1} parent=1 // pred_check
      _
    $region19: #{question_encoder_forward.1} parent=1 // pred_check_branch
      %33 = sbr.rel (0) target = $region21
    $region20: #{question_encoder_forward.1} parent=1 // pred_region
      _
    $region21: #{question_encoder_forward.1} parent=1 // pred_fallthru
      _
    // Predicated region
    $region22: #{question_encoder_forward.1} parent=1 // pred_check
      _
    $region23: #{question_encoder_forward.1} parent=1 // pred_check_branch
      %35 = sbr.rel (0) target = $region25
    $region24: #{question_encoder_forward.1} parent=1 // pred_region
      _
    $region25: #{question_encoder_forward.1} parent=1 // pred_fallthru
      _
    // Predicated region
    $region26: #{question_encoder_forward.1} parent=1 // pred_check
      _
    $region27: #{question_encoder_forward.1} parent=1 // pred_check_branch
      %37 = sbr.rel (0) target = $region29
    $region28: #{question_encoder_forward.1} parent=1 // pred_region
      _
    $region29: #{question_encoder_forward.1} parent=1 // pred_fallthru
      _
    // Predicated region
    $region30: #{question_encoder_forward.1} parent=1 // pred_check
      _
    $region31: #{question_encoder_forward.1} parent=1 // pred_check_branch
      %39 = sbr.rel (0) target = $region33
    $region32: #{question_encoder_forward.1} parent=1 // pred_region
      _
    $region33: #{question_encoder_forward.1} parent=1 // pred_fallthru
      _
    // Predicated region
    $region34: #{question_encoder_forward.1} parent=1 // pred_check
      _
    $region35: #{question_encoder_forward.1} parent=1 // pred_check_branch
      %41 = sbr.rel (0) target = $region37
    $region36: #{question_encoder_forward.1} parent=1 // pred_region
      %43 = dma.done [#allocation9], 16
    $region37: #{question_encoder_forward.1} parent=1 // pred_fallthru
      _
    %44 = sfence
    %s45 = sld [smem:[#allocation7]]
    %s46 = sld [smem:[#allocation7 + $0x1]]
    %s47 = sshra.s32 %s45, 1
    %s48 = sand.u32 %s45, 1
    %p49 = scmp.eq.s32.totalorder %s48, 1
    // While loop
    $region38: #{question_encoder_forward.1} parent=1 // loop_pre_header
      _
    $region39: #{question_encoder_forward.1} parent=1 // loop_header
      %s51 = sphi 0, %s53
      %p52 = scmp.ge.s32.totalorder %s51, %s46
    $region40: #{question_encoder_forward.1} parent=1 // loop_header_branch
      %55 = sbr.rel (%p52) target = $region44
    $region41: #{question_encoder_forward.1} parent=1 // loop_body
      %s56 = smul.u32 %s51, 16
      %s57 = scalar_lea.vmem %s2, %s56
      %v58 = vld [vmem:[%s57] sm:$0xff]
      %v59 = vld [vmem:[%s57 + $0x8] sm:$0xff]
      %v60 = vld [vmem:[%s3] sm:$0xff]
      %v61 = vld [vmem:[%s3 + $0x8] sm:$0xff]
      %v62 = vld [vmem:[%s3 + $0x10] sm:$0xff]
      %v63 = vld [vmem:[%s3 + $0x18] sm:$0xff]
      %v64 = vld [vmem:[%s5] sm:$0x1]
      %v66 = vperm.slane %v64, 0
      %vm68 = vcmask 261120
      %v70 = vsel %vm68, %v58, 0
      %v73 = vsel %vm68, %v59, 0
      %75 = vmatpush.msra.mxu0 0.0
      %76 = vmatpush.msra.mxu0 0.0
      %77 = vmatpush.msra.mxu0 0.0
      %78 = vmatpush.msra.mxu0 0.0
      %79 = vmatpush.msra.mxu0 0.0
      %80 = vmatpush.msra.mxu0 0.0
      %81 = vmatpush.msra.mxu0 0.0
      %82 = vmatpush.msra.mxu0 0.0
      %83 = vmatpush.msra.mxu0 0.0
      %84 = vmatpush.msra.mxu0 0.0
      %85 = vmatpush.msra.mxu0 0.0
      %86 = vmatpush.msra.mxu0 0.0
      %87 = vmatpush.msra.mxu0 %v63
      %88 = vmatpush.msra.mxu0 %v62
      %89 = vmatpush.msra.mxu0 %v61
      %90 = vmatpush.msra.mxu0 %v60
      %91 = vmatmul.f32.gmra.mxu0 %v70
      %v92 = vpop.f32.mrf.mxu0
      %v93 = vadd.f32 %v66, %v92
      %94 = vmatmul.f32.gmra.mxu0 %v73
      %v95 = vpop.f32.mrf.mxu0
      %v96 = vadd.f32 %v66, %v95
      %97 = vdwg.mxu0
      %s98 = scalar_lea.vmem [#allocation2], %s56
      %99 = vst [vmem:[%s98] sm:$0xff] %v93
      %100 = vst [vmem:[%s98 + $0x8] sm:$0xff] %v96
    $region42: #{question_encoder_forward.1} parent=1 // loop_footer
      %s53 = sadd.s32 %s51, 1
    $region43: #{question_encoder_forward.1} parent=1 // loop_footer_branch
      %50 = sbr.rel target = $region39
    $region44: #{question_encoder_forward.1} parent=1 // loop_exit
      _
    %vm101 = vcmask 254976
    %102 = vst.msk [vmem:[#allocation3] sm:$0x3] %vm101, 0.0
    %103 = vst.msk [vmem:[#allocation4] sm:$0x3] %vm101, 0.0
    // While loop
    $region45: #{question_encoder_forward.1} parent=1 // loop_pre_header
      _
    $region46: #{question_encoder_forward.1} parent=1 // loop_header
      %s105 = sphi 0, %s107
      %p106 = scmp.ge.s32.totalorder %s105, %s47
    $region47: #{question_encoder_forward.1} parent=1 // loop_header_branch
      %109 = sbr.rel (%p106) target = $region51
    $region48: #{question_encoder_forward.1} parent=1 // loop_body
      %s110 = smul.u32 %s105, 2
      %s111 = smul.u32 %s105, 4
      %v112 = vld [vmem:[#allocation3] sm:$0x3]
      %v113 = vld [vmem:[#allocation4] sm:$0x3]
      %s114 = scalar_lea.vmem [#allocation2], %s111
      %v115 = vld [vmem:[%s114] sm:$0x3]
      %v116 = vld [vmem:[%s4] sm:$0xff]
      %v117 = vld [vmem:[%s4 + $0x8] sm:$0xff]
      %v118 = vld [vmem:[%s4 + $0x10] sm:$0xff]
      %v119 = vld [vmem:[%s4 + $0x18] sm:$0xff]
      %vm120 = vcmask 261120
      %v122 = vsel %vm120, %v112, 0
      %124 = vmatpush.msra.mxu0 0.0
      %125 = vmatpush.msra.mxu0 0.0
      %126 = vmatpush.msra.mxu0 0.0
      %127 = vmatpush.msra.mxu0 0.0
      %128 = vmatpush.msra.mxu0 0.0
      %129 = vmatpush.msra.mxu0 0.0
      %130 = vmatpush.msra.mxu0 0.0
      %131 = vmatpush.msra.mxu0 0.0
      %132 = vmatpush.msra.mxu0 0.0
      %133 = vmatpush.msra.mxu0 0.0
      %134 = vmatpush.msra.mxu0 0.0
      %135 = vmatpush.msra.mxu0 0.0
      %136 = vmatpush.msra.mxu0 %v119
      %137 = vmatpush.msra.mxu0 %v118
      %138 = vmatpush.msra.mxu0 %v117
      %139 = vmatpush.msra.mxu0 %v116
      %140 = vmatmul.f32.gmra.mxu0 %v122
      %v141 = vpop.f32.mrf.mxu0
      %v142 = vadd.f32 0.0, %v141
      %143 = vdwg.mxu0
      %v144 = vadd.f32 %v115, %v142
      %v145 = vxor.u32 %v144, 2147483648
      %v146 = vmul.f32 %v145, 1.442695
      %v147 = vpow.pop %v146
      %v148 = vadd.f32 %v147, 1.0
      %v149 = vrcp.pop %v148
      %v150 = vmul.f32 %v148, %v149
      %v151 = vsub.f32 1.0, %v150
      %v152 = vmul.f32 %v149, %v151
      %v153 = vadd.f32 %v149, %v152
      %vm154 = vweird.f32 %v148
      %vm155 = vweird.f32 %v149
      %vm156 = vmor %vm154, %vm155
      %v157 = vsel %vm156, %v149, %v153
      %v158 = vand.u32 2147483647, %v148
      %vm159 = vcmp.eq.f32.partialorder %v158, 8.507059e+37
      %v160 = vand.u32 %v148, 2147483648
      %v161 = vor.u32 1.1754944e-38, %v160
      %v162 = vsel %vm159, %v161, %v157
      %v163 = vmul.f32 1.0, %v162
      %v164 = vtanh.pop %v144
      %166 = vrot.lane.b32.xlu0 %v113, 32
      %v167 = vpop.permute.xlu0 %166
      %v169 = vmul.f32 %v163, %v167
      %171 = vrot.lane.b32.xlu0 %v164, 32
      %v172 = vpop.permute.xlu0 %171
      %v174 = vmul.f32 %v163, %v172
      %176 = vrot.lane.b32.xlu0 %v174, 32
      %v177 = vpop.permute.xlu0 %176
      %v179 = vadd.f32 %v169, %v177
      %v180 = vtanh.pop %v179
      %182 = vrot.lane.b32.xlu0 %v180, 32
      %v183 = vpop.permute.xlu0 %182
      %v185 = vmul.f32 %v163, %v183
      %s186 = scalar_lea.vmem %s1, %s111
      %v187 = vld [vmem:[%s186] sm:$0x3]
      %189 = vrot.lane.b32.xlu0 %v185, 64
      %v190 = vpop.permute.xlu0 %189
      %v192 = vmul.f32 %v187, %v190
      %193 = vrot.lane.b32.xlu0 %v112, 64
      %v194 = vpop.permute.xlu0 %193
      %v196 = vsub.f32 %v185, %v194
      %198 = vrot.lane.b32.xlu0 %v196, 64
      %v199 = vpop.permute.xlu0 %198
      %v201 = vmul.f32 %v187, %v199
      %v202 = vadd.f32 %v112, %v201
      %203 = vst.msk [vmem:[#allocation3] sm:$0x3] %vm101, %v202
      %v204 = vsub.f32 %v179, %v167
      %206 = vrot.lane.b32.xlu0 %v204, 96
      %v207 = vpop.permute.xlu0 %206
      %v209 = vmul.f32 %v187, %v207
      %v210 = vadd.f32 %v113, %v209
      %211 = vst.msk [vmem:[#allocation4] sm:$0x3] %vm101, %v210
      %s212 = scalar_lea.vmem [#allocation6], %s111
      %213 = vst.msk [vmem:[%s212] sm:$0x3] %vm101, %v192
      %s214 = sadd.s32 %s110, 1
      %s215 = smul.u32 %s214, 2
      %v216 = vld [vmem:[#allocation3] sm:$0x3]
      %v217 = vld [vmem:[#allocation4] sm:$0x3]
      %s218 = scalar_lea.vmem [#allocation2], %s215
      %v219 = vld [vmem:[%s218] sm:$0x3]
      %v220 = vld [vmem:[%s4] sm:$0xff]
      %v221 = vld [vmem:[%s4 + $0x8] sm:$0xff]
      %v222 = vld [vmem:[%s4 + $0x10] sm:$0xff]
      %v223 = vld [vmem:[%s4 + $0x18] sm:$0xff]
      %v225 = vsel %vm120, %v216, 0
      %227 = vmatpush.msra.mxu0 0.0
      %228 = vmatpush.msra.mxu0 0.0
      %229 = vmatpush.msra.mxu0 0.0
      %230 = vmatpush.msra.mxu0 0.0
      %231 = vmatpush.msra.mxu0 0.0
      %232 = vmatpush.msra.mxu0 0.0
      %233 = vmatpush.msra.mxu0 0.0
      %234 = vmatpush.msra.mxu0 0.0
      %235 = vmatpush.msra.mxu0 0.0
      %236 = vmatpush.msra.mxu0 0.0
      %237 = vmatpush.msra.mxu0 0.0
      %238 = vmatpush.msra.mxu0 0.0
      %239 = vmatpush.msra.mxu0 %v223
      %240 = vmatpush.msra.mxu0 %v222
      %241 = vmatpush.msra.mxu0 %v221
      %242 = vmatpush.msra.mxu0 %v220
      %243 = vmatmul.f32.gmra.mxu0 %v225
      %v244 = vpop.f32.mrf.mxu0
      %v245 = vadd.f32 0.0, %v244
      %246 = vdwg.mxu0
      %v247 = vadd.f32 %v219, %v245
      %v248 = vxor.u32 %v247, 2147483648
      %v249 = vmul.f32 %v248, 1.442695
      %v250 = vpow.pop %v249
      %v251 = vadd.f32 %v250, 1.0
      %v252 = vrcp.pop %v251
      %v253 = vmul.f32 %v251, %v252
      %v254 = vsub.f32 1.0, %v253
      %v255 = vmul.f32 %v252, %v254
      %v256 = vadd.f32 %v252, %v255
      %vm257 = vweird.f32 %v251
      %vm258 = vweird.f32 %v252
      %vm259 = vmor %vm257, %vm258
      %v260 = vsel %vm259, %v252, %v256
      %v261 = vand.u32 2147483647, %v251
      %vm262 = vcmp.eq.f32.partialorder %v261, 8.507059e+37
      %v263 = vand.u32 %v251, 2147483648
      %v264 = vor.u32 1.1754944e-38, %v263
      %v265 = vsel %vm262, %v264, %v260
      %v266 = vmul.f32 1.0, %v265
      %v267 = vtanh.pop %v247
      %269 = vrot.lane.b32.xlu0 %v217, 32
      %v270 = vpop.permute.xlu0 %269
      %v272 = vmul.f32 %v266, %v270
      %274 = vrot.lane.b32.xlu0 %v267, 32
      %v275 = vpop.permute.xlu0 %274
      %v277 = vmul.f32 %v266, %v275
      %279 = vrot.lane.b32.xlu0 %v277, 32
      %v280 = vpop.permute.xlu0 %279
      %v282 = vadd.f32 %v272, %v280
      %v283 = vtanh.pop %v282
      %285 = vrot.lane.b32.xlu0 %v283, 32
      %v286 = vpop.permute.xlu0 %285
      %v288 = vmul.f32 %v266, %v286
      %s289 = scalar_lea.vmem %s1, %s215
      %v290 = vld [vmem:[%s289] sm:$0x3]
      %292 = vrot.lane.b32.xlu0 %v288, 64
      %v293 = vpop.permute.xlu0 %292
      %v295 = vmul.f32 %v290, %v293
      %296 = vrot.lane.b32.xlu0 %v216, 64
      %v297 = vpop.permute.xlu0 %296
      %v299 = vsub.f32 %v288, %v297
      %301 = vrot.lane.b32.xlu0 %v299, 64
      %v302 = vpop.permute.xlu0 %301
      %v304 = vmul.f32 %v290, %v302
      %v305 = vadd.f32 %v216, %v304
      %306 = vst.msk [vmem:[#allocation3] sm:$0x3] %vm101, %v305
      %v307 = vsub.f32 %v282, %v270
      %309 = vrot.lane.b32.xlu0 %v307, 96
      %v310 = vpop.permute.xlu0 %309
      %v312 = vmul.f32 %v290, %v310
      %v313 = vadd.f32 %v217, %v312
      %314 = vst.msk [vmem:[#allocation4] sm:$0x3] %vm101, %v313
      %s315 = scalar_lea.vmem [#allocation6], %s215
      %316 = vst.msk [vmem:[%s315] sm:$0x3] %vm101, %v295
    $region49: #{question_encoder_forward.1} parent=1 // loop_footer
      %s107 = sadd.s32 %s105, 1
    $region50: #{question_encoder_forward.1} parent=1 // loop_footer_branch
      %104 = sbr.rel target = $region46
    $region51: #{question_encoder_forward.1} parent=1 // loop_exit
      _
    // Predicated region
    $region52: #{question_encoder_forward.1} parent=1 // pred_check
      %p317 = pneg %p49
    $region53: #{question_encoder_forward.1} parent=1 // pred_check_branch
      %319 = sbr.rel (%p317) target = $region55
    $region54: #{question_encoder_forward.1} parent=1 // pred_region
      %s320 = ssub.s32 %s45, 1
      %s321 = smul.u32 %s320, 2
      %v322 = vld [vmem:[#allocation3] sm:$0x3]
      %v323 = vld [vmem:[#allocation4] sm:$0x3]
      %s324 = scalar_lea.vmem [#allocation2], %s321
      %v325 = vld [vmem:[%s324] sm:$0x3]
      %v326 = vld [vmem:[%s4] sm:$0xff]
      %v327 = vld [vmem:[%s4 + $0x8] sm:$0xff]
      %v328 = vld [vmem:[%s4 + $0x10] sm:$0xff]
      %v329 = vld [vmem:[%s4 + $0x18] sm:$0xff]
      %vm330 = vcmask 261120
      %v332 = vsel %vm330, %v322, 0
      %334 = vmatpush.msra.mxu0 0.0
      %335 = vmatpush.msra.mxu0 0.0
      %336 = vmatpush.msra.mxu0 0.0
      %337 = vmatpush.msra.mxu0 0.0
      %338 = vmatpush.msra.mxu0 0.0
      %339 = vmatpush.msra.mxu0 0.0
      %340 = vmatpush.msra.mxu0 0.0
      %341 = vmatpush.msra.mxu0 0.0
      %342 = vmatpush.msra.mxu0 0.0
      %343 = vmatpush.msra.mxu0 0.0
      %344 = vmatpush.msra.mxu0 0.0
      %345 = vmatpush.msra.mxu0 0.0
      %346 = vmatpush.msra.mxu0 %v329
      %347 = vmatpush.msra.mxu0 %v328
      %348 = vmatpush.msra.mxu0 %v327
      %349 = vmatpush.msra.mxu0 %v326
      %350 = vmatmul.f32.gmra.mxu0 %v332
      %v351 = vpop.f32.mrf.mxu0
      %v352 = vadd.f32 0.0, %v351
      %353 = vdwg.mxu0
      %v354 = vadd.f32 %v325, %v352
      %v355 = vxor.u32 %v354, 2147483648
      %v356 = vmul.f32 %v355, 1.442695
      %v357 = vpow.pop %v356
      %v358 = vadd.f32 %v357, 1.0
      %v359 = vrcp.pop %v358
      %v360 = vmul.f32 %v358, %v359
      %v361 = vsub.f32 1.0, %v360
      %v362 = vmul.f32 %v359, %v361
      %v363 = vadd.f32 %v359, %v362
      %vm364 = vweird.f32 %v358
      %vm365 = vweird.f32 %v359
      %vm366 = vmor %vm364, %vm365
      %v367 = vsel %vm366, %v359, %v363
      %v368 = vand.u32 2147483647, %v358
      %vm369 = vcmp.eq.f32.partialorder %v368, 8.507059e+37
      %v370 = vand.u32 %v358, 2147483648
      %v371 = vor.u32 1.1754944e-38, %v370
      %v372 = vsel %vm369, %v371, %v367
      %v373 = vmul.f32 1.0, %v372
      %v374 = vtanh.pop %v354
      %376 = vrot.lane.b32.xlu0 %v323, 32
      %v377 = vpop.permute.xlu0 %376
      %v379 = vmul.f32 %v373, %v377
      %381 = vrot.lane.b32.xlu0 %v374, 32
      %v382 = vpop.permute.xlu0 %381
      %v384 = vmul.f32 %v373, %v382
      %386 = vrot.lane.b32.xlu0 %v384, 32
      %v387 = vpop.permute.xlu0 %386
      %v389 = vadd.f32 %v379, %v387
      %v390 = vtanh.pop %v389
      %392 = vrot.lane.b32.xlu0 %v390, 32
      %v393 = vpop.permute.xlu0 %392
      %v395 = vmul.f32 %v373, %v393
      %s396 = scalar_lea.vmem %s1, %s321
      %v397 = vld [vmem:[%s396] sm:$0x3]
      %399 = vrot.lane.b32.xlu0 %v395, 64
      %v400 = vpop.permute.xlu0 %399
      %v402 = vmul.f32 %v397, %v400
      %403 = vrot.lane.b32.xlu0 %v322, 64
      %v404 = vpop.permute.xlu0 %403
      %v406 = vsub.f32 %v395, %v404
      %408 = vrot.lane.b32.xlu0 %v406, 64
      %v409 = vpop.permute.xlu0 %408
      %v411 = vmul.f32 %v397, %v409
      %v412 = vadd.f32 %v322, %v411
      %413 = vst.msk [vmem:[#allocation3] sm:$0x3] %vm101, %v412
      %v414 = vsub.f32 %v389, %v377
      %416 = vrot.lane.b32.xlu0 %v414, 96
      %v417 = vpop.permute.xlu0 %416
      %v419 = vmul.f32 %v397, %v417
      %v420 = vadd.f32 %v323, %v419
      %421 = vst.msk [vmem:[#allocation4] sm:$0x3] %vm101, %v420
      %s422 = scalar_lea.vmem [#allocation6], %s321
      %423 = vst.msk [vmem:[%s422] sm:$0x3] %vm101, %v402
    $region55: #{question_encoder_forward.1} parent=1 // pred_fallthru
      _
    %s424 = ssub.s32 8, %s45
    // While loop
    $region56: #{question_encoder_forward.1} parent=1 // loop_pre_header
      _
    $region57: #{question_encoder_forward.1} parent=1 // loop_header
      %s426 = sphi 0, %s428
      %p427 = scmp.ge.s32.totalorder %s426, %s424
    $region58: #{question_encoder_forward.1} parent=1 // loop_header_branch
      %430 = sbr.rel (%p427) target = $region62
    $region59: #{question_encoder_forward.1} parent=1 // loop_body
      %s431 = sadd.s32 %s45, %s426
      %s432 = smul.u32 %s431, 2
      %s433 = scalar_lea.vmem [#allocation6], %s432
      %434 = vst.msk [vmem:[%s433] sm:$0x3] %vm101, 0.0
    $region60: #{question_encoder_forward.1} parent=1 // loop_footer
      %s428 = sadd.s32 %s426, 1
    $region61: #{question_encoder_forward.1} parent=1 // loop_footer_branch
      %425 = sbr.rel target = $region57
    $region62: #{question_encoder_forward.1} parent=1 // loop_exit
      _
    %v435 = vld [vmem:[#allocation3] sm:$0x3]
    %436 = vst.msk [vmem:[#allocation5] sm:$0x3] %vm101, %v435
    %v437 = vld [vmem:[#allocation4] sm:$0x3]
    %438 = vst.msk [vmem:[#allocation5 + $0x4] sm:$0x3] %vm101, %v437
    // While loop
    $region63: #{question_encoder_forward.1} parent=1 // loop_pre_header
      _
    $region64: #{question_encoder_forward.1} parent=1 // loop_header
      %s440 = sphi 0, %s442
      %p441 = scmp.ge.s32.totalorder %s440, %s46
    $region65: #{question_encoder_forward.1} parent=1 // loop_header_branch
      %444 = sbr.rel (%p441) target = $region69
    $region66: #{question_encoder_forward.1} parent=1 // loop_body
      %s445 = smul.u32 %s440, 16
      %s446 = scalar_lea.vmem [#allocation6], %s445
      %v447 = vld [vmem:[%s446] sm:$0xff]
      %v448 = vld [vmem:[%s446 + $0x8] sm:$0xff]
      %s449 = scalar_lea.vmem %s3, 32
      %v450 = vld [vmem:[%s449] sm:$0xff]
      %v451 = vld [vmem:[%s449 + $0x8] sm:$0xff]
      %v452 = vld [vmem:[%s449 + $0x10] sm:$0xff]
      %v453 = vld [vmem:[%s449 + $0x18] sm:$0xff]
      %s454 = scalar_lea.vmem %s5, 1
      %v455 = vld [vmem:[%s454] sm:$0x1]
      %v457 = vperm.slane %v455, 0
      %vm459 = vcmask 261120
      %v461 = vsel %vm459, %v447, 0
      %v464 = vsel %vm459, %v448, 0
      %466 = vmatpush.msra.mxu0 0.0
      %467 = vmatpush.msra.mxu0 0.0
      %468 = vmatpush.msra.mxu0 0.0
      %469 = vmatpush.msra.mxu0 0.0
      %470 = vmatpush.msra.mxu0 0.0
      %471 = vmatpush.msra.mxu0 0.0
      %472 = vmatpush.msra.mxu0 0.0
      %473 = vmatpush.msra.mxu0 0.0
      %474 = vmatpush.msra.mxu0 0.0
      %475 = vmatpush.msra.mxu0 0.0
      %476 = vmatpush.msra.mxu0 0.0
      %477 = vmatpush.msra.mxu0 0.0
      %478 = vmatpush.msra.mxu0 %v453
      %479 = vmatpush.msra.mxu0 %v452
      %480 = vmatpush.msra.mxu0 %v451
      %481 = vmatpush.msra.mxu0 %v450
      %482 = vmatmul.f32.gmra.mxu0 %v461
      %v483 = vpop.f32.mrf.mxu0
      %v484 = vadd.f32 %v457, %v483
      %485 = vmatmul.f32.gmra.mxu0 %v464
      %v486 = vpop.f32.mrf.mxu0
      %v487 = vadd.f32 %v457, %v486
      %488 = vdwg.mxu0
      %s489 = scalar_lea.vmem [#allocation2], %s445
      %490 = vst [vmem:[%s489] sm:$0xff] %v484
      %491 = vst [vmem:[%s489 + $0x8] sm:$0xff] %v487
    $region67: #{question_encoder_forward.1} parent=1 // loop_footer
      %s442 = sadd.s32 %s440, 1
    $region68: #{question_encoder_forward.1} parent=1 // loop_footer_branch
      %439 = sbr.rel target = $region64
    $region69: #{question_encoder_forward.1} parent=1 // loop_exit
      _
    %492 = vst.msk [vmem:[#allocation3] sm:$0x3] %vm101, 0.0
    %493 = vst.msk [vmem:[#allocation4] sm:$0x3] %vm101, 0.0
    // While loop
    $region70: #{question_encoder_forward.1} parent=1 // loop_pre_header
      _
    $region71: #{question_encoder_forward.1} parent=1 // loop_header
      %s495 = sphi 0, %s497
      %p496 = scmp.ge.s32.totalorder %s495, %s47
    $region72: #{question_encoder_forward.1} parent=1 // loop_header_branch
      %499 = sbr.rel (%p496) target = $region76
    $region73: #{question_encoder_forward.1} parent=1 // loop_body
      %s500 = smul.u32 %s495, 2
      %s501 = smul.u32 %s495, 4
      %v502 = vld [vmem:[#allocation3] sm:$0x3]
      %v503 = vld [vmem:[#allocation4] sm:$0x3]
      %s504 = scalar_lea.vmem [#allocation2], %s501
      %v505 = vld [vmem:[%s504] sm:$0x3]
      %s506 = scalar_lea.vmem %s4, 32
      %v507 = vld [vmem:[%s506] sm:$0xff]
      %v508 = vld [vmem:[%s506 + $0x8] sm:$0xff]
      %v509 = vld [vmem:[%s506 + $0x10] sm:$0xff]
      %v510 = vld [vmem:[%s506 + $0x18] sm:$0xff]
      %vm511 = vcmask 261120
      %v513 = vsel %vm511, %v502, 0
      %515 = vmatpush.msra.mxu0 0.0
      %516 = vmatpush.msra.mxu0 0.0
      %517 = vmatpush.msra.mxu0 0.0
      %518 = vmatpush.msra.mxu0 0.0
      %519 = vmatpush.msra.mxu0 0.0
      %520 = vmatpush.msra.mxu0 0.0
      %521 = vmatpush.msra.mxu0 0.0
      %522 = vmatpush.msra.mxu0 0.0
      %523 = vmatpush.msra.mxu0 0.0
      %524 = vmatpush.msra.mxu0 0.0
      %525 = vmatpush.msra.mxu0 0.0
      %526 = vmatpush.msra.mxu0 0.0
      %527 = vmatpush.msra.mxu0 %v510
      %528 = vmatpush.msra.mxu0 %v509
      %529 = vmatpush.msra.mxu0 %v508
      %530 = vmatpush.msra.mxu0 %v507
      %531 = vmatmul.f32.gmra.mxu0 %v513
      %v532 = vpop.f32.mrf.mxu0
      %v533 = vadd.f32 0.0, %v532
      %534 = vdwg.mxu0
      %v535 = vadd.f32 %v505, %v533
      %v536 = vxor.u32 %v535, 2147483648
      %v537 = vmul.f32 %v536, 1.442695
      %v538 = vpow.pop %v537
      %v539 = vadd.f32 %v538, 1.0
      %v540 = vrcp.pop %v539
      %v541 = vmul.f32 %v539, %v540
      %v542 = vsub.f32 1.0, %v541
      %v543 = vmul.f32 %v540, %v542
      %v544 = vadd.f32 %v540, %v543
      %vm545 = vweird.f32 %v539
      %vm546 = vweird.f32 %v540
      %vm547 = vmor %vm545, %vm546
      %v548 = vsel %vm547, %v540, %v544
      %v549 = vand.u32 2147483647, %v539
      %vm550 = vcmp.eq.f32.partialorder %v549, 8.507059e+37
      %v551 = vand.u32 %v539, 2147483648
      %v552 = vor.u32 1.1754944e-38, %v551
      %v553 = vsel %vm550, %v552, %v548
      %v554 = vmul.f32 1.0, %v553
      %v555 = vtanh.pop %v535
      %557 = vrot.lane.b32.xlu0 %v503, 32
      %v558 = vpop.permute.xlu0 %557
      %v560 = vmul.f32 %v554, %v558
      %562 = vrot.lane.b32.xlu0 %v555, 32
      %v563 = vpop.permute.xlu0 %562
      %v565 = vmul.f32 %v554, %v563
      %567 = vrot.lane.b32.xlu0 %v565, 32
      %v568 = vpop.permute.xlu0 %567
      %v570 = vadd.f32 %v560, %v568
      %v571 = vtanh.pop %v570
      %573 = vrot.lane.b32.xlu0 %v571, 32
      %v574 = vpop.permute.xlu0 %573
      %v576 = vmul.f32 %v554, %v574
      %s577 = scalar_lea.vmem %s1, %s501
      %v578 = vld [vmem:[%s577] sm:$0x3]
      %580 = vrot.lane.b32.xlu0 %v576, 64
      %v581 = vpop.permute.xlu0 %580
      %v583 = vmul.f32 %v578, %v581
      %584 = vrot.lane.b32.xlu0 %v502, 64
      %v585 = vpop.permute.xlu0 %584
      %v587 = vsub.f32 %v576, %v585
      %589 = vrot.lane.b32.xlu0 %v587, 64
      %v590 = vpop.permute.xlu0 %589
      %v592 = vmul.f32 %v578, %v590
      %v593 = vadd.f32 %v502, %v592
      %594 = vst.msk [vmem:[#allocation3] sm:$0x3] %vm101, %v593
      %v595 = vsub.f32 %v570, %v558
      %597 = vrot.lane.b32.xlu0 %v595, 96
      %v598 = vpop.permute.xlu0 %597
      %v600 = vmul.f32 %v578, %v598
      %v601 = vadd.f32 %v503, %v600
      %602 = vst.msk [vmem:[#allocation4] sm:$0x3] %vm101, %v601
      %s603 = scalar_lea.vmem %s8, %s501
      %604 = vst.msk [vmem:[%s603] sm:$0x3] %vm101, %v583
      %s605 = sadd.s32 %s500, 1
      %s606 = smul.u32 %s605, 2
      %v607 = vld [vmem:[#allocation3] sm:$0x3]
      %v608 = vld [vmem:[#allocation4] sm:$0x3]
      %s609 = scalar_lea.vmem [#allocation2], %s606
      %v610 = vld [vmem:[%s609] sm:$0x3]
      %v611 = vld [vmem:[%s506] sm:$0xff]
      %v612 = vld [vmem:[%s506 + $0x8] sm:$0xff]
      %v613 = vld [vmem:[%s506 + $0x10] sm:$0xff]
      %v614 = vld [vmem:[%s506 + $0x18] sm:$0xff]
      %v616 = vsel %vm511, %v607, 0
      %618 = vmatpush.msra.mxu0 0.0
      %619 = vmatpush.msra.mxu0 0.0
      %620 = vmatpush.msra.mxu0 0.0
      %621 = vmatpush.msra.mxu0 0.0
      %622 = vmatpush.msra.mxu0 0.0
      %623 = vmatpush.msra.mxu0 0.0
      %624 = vmatpush.msra.mxu0 0.0
      %625 = vmatpush.msra.mxu0 0.0
      %626 = vmatpush.msra.mxu0 0.0
      %627 = vmatpush.msra.mxu0 0.0
      %628 = vmatpush.msra.mxu0 0.0
      %629 = vmatpush.msra.mxu0 0.0
      %630 = vmatpush.msra.mxu0 %v614
      %631 = vmatpush.msra.mxu0 %v613
      %632 = vmatpush.msra.mxu0 %v612
      %633 = vmatpush.msra.mxu0 %v611
      %634 = vmatmul.f32.gmra.mxu0 %v616
      %v635 = vpop.f32.mrf.mxu0
      %v636 = vadd.f32 0.0, %v635
      %637 = vdwg.mxu0
      %v638 = vadd.f32 %v610, %v636
      %v639 = vxor.u32 %v638, 2147483648
      %v640 = vmul.f32 %v639, 1.442695
      %v641 = vpow.pop %v640
      %v642 = vadd.f32 %v641, 1.0
      %v643 = vrcp.pop %v642
      %v644 = vmul.f32 %v642, %v643
      %v645 = vsub.f32 1.0, %v644
      %v646 = vmul.f32 %v643, %v645
      %v647 = vadd.f32 %v643, %v646
      %vm648 = vweird.f32 %v642
      %vm649 = vweird.f32 %v643
      %vm650 = vmor %vm648, %vm649
      %v651 = vsel %vm650, %v643, %v647
      %v652 = vand.u32 2147483647, %v642
      %vm653 = vcmp.eq.f32.partialorder %v652, 8.507059e+37
      %v654 = vand.u32 %v642, 2147483648
      %v655 = vor.u32 1.1754944e-38, %v654
      %v656 = vsel %vm653, %v655, %v651
      %v657 = vmul.f32 1.0, %v656
      %v658 = vtanh.pop %v638
      %660 = vrot.lane.b32.xlu0 %v608, 32
      %v661 = vpop.permute.xlu0 %660
      %v663 = vmul.f32 %v657, %v661
      %665 = vrot.lane.b32.xlu0 %v658, 32
      %v666 = vpop.permute.xlu0 %665
      %v668 = vmul.f32 %v657, %v666
      %670 = vrot.lane.b32.xlu0 %v668, 32
      %v671 = vpop.permute.xlu0 %670
      %v673 = vadd.f32 %v663, %v671
      %v674 = vtanh.pop %v673
      %676 = vrot.lane.b32.xlu0 %v674, 32
      %v677 = vpop.permute.xlu0 %676
      %v679 = vmul.f32 %v657, %v677
      %s680 = scalar_lea.vmem %s1, %s606
      %v681 = vld [vmem:[%s680] sm:$0x3]
      %683 = vrot.lane.b32.xlu0 %v679, 64
      %v684 = vpop.permute.xlu0 %683
      %v686 = vmul.f32 %v681, %v684
      %687 = vrot.lane.b32.xlu0 %v607, 64
      %v688 = vpop.permute.xlu0 %687
      %v690 = vsub.f32 %v679, %v688
      %692 = vrot.lane.b32.xlu0 %v690, 64
      %v693 = vpop.permute.xlu0 %692
      %v695 = vmul.f32 %v681, %v693
      %v696 = vadd.f32 %v607, %v695
      %697 = vst.msk [vmem:[#allocation3] sm:$0x3] %vm101, %v696
      %v698 = vsub.f32 %v673, %v661
      %700 = vrot.lane.b32.xlu0 %v698, 96
      %v701 = vpop.permute.xlu0 %700
      %v703 = vmul.f32 %v681, %v701
      %v704 = vadd.f32 %v608, %v703
      %705 = vst.msk [vmem:[#allocation4] sm:$0x3] %vm101, %v704
      %s706 = scalar_lea.vmem %s8, %s606
      %707 = vst.msk [vmem:[%s706] sm:$0x3] %vm101, %v686
    $region74: #{question_encoder_forward.1} parent=1 // loop_footer
      %s497 = sadd.s32 %s495, 1
    $region75: #{question_encoder_forward.1} parent=1 // loop_footer_branch
      %494 = sbr.rel target = $region71
    $region76: #{question_encoder_forward.1} parent=1 // loop_exit
      _
    // Predicated region
    $region77: #{question_encoder_forward.1} parent=1 // pred_check
      %p708 = pneg %p49
    $region78: #{question_encoder_forward.1} parent=1 // pred_check_branch
      %710 = sbr.rel (%p708) target = $region80
    $region79: #{question_encoder_forward.1} parent=1 // pred_region
      %s711 = ssub.s32 %s45, 1
      %s712 = smul.u32 %s711, 2
      %v713 = vld [vmem:[#allocation3] sm:$0x3]
      %v714 = vld [vmem:[#allocation4] sm:$0x3]
      %s715 = scalar_lea.vmem [#allocation2], %s712
      %v716 = vld [vmem:[%s715] sm:$0x3]
      %s717 = scalar_lea.vmem %s4, 32
      %v718 = vld [vmem:[%s717] sm:$0xff]
      %v719 = vld [vmem:[%s717 + $0x8] sm:$0xff]
      %v720 = vld [vmem:[%s717 + $0x10] sm:$0xff]
      %v721 = vld [vmem:[%s717 + $0x18] sm:$0xff]
      %vm722 = vcmask 261120
      %v724 = vsel %vm722, %v713, 0
      %726 = vmatpush.msra.mxu0 0.0
      %727 = vmatpush.msra.mxu0 0.0
      %728 = vmatpush.msra.mxu0 0.0
      %729 = vmatpush.msra.mxu0 0.0
      %730 = vmatpush.msra.mxu0 0.0
      %731 = vmatpush.msra.mxu0 0.0
      %732 = vmatpush.msra.mxu0 0.0
      %733 = vmatpush.msra.mxu0 0.0
      %734 = vmatpush.msra.mxu0 0.0
      %735 = vmatpush.msra.mxu0 0.0
      %736 = vmatpush.msra.mxu0 0.0
      %737 = vmatpush.msra.mxu0 0.0
      %738 = vmatpush.msra.mxu0 %v721
      %739 = vmatpush.msra.mxu0 %v720
      %740 = vmatpush.msra.mxu0 %v719
      %741 = vmatpush.msra.mxu0 %v718
      %742 = vmatmul.f32.gmra.mxu0 %v724
      %v743 = vpop.f32.mrf.mxu0
      %v744 = vadd.f32 0.0, %v743
      %745 = vdwg.mxu0
      %v746 = vadd.f32 %v716, %v744
      %v747 = vxor.u32 %v746, 2147483648
      %v748 = vmul.f32 %v747, 1.442695
      %v749 = vpow.pop %v748
      %v750 = vadd.f32 %v749, 1.0
      %v751 = vrcp.pop %v750
      %v752 = vmul.f32 %v750, %v751
      %v753 = vsub.f32 1.0, %v752
      %v754 = vmul.f32 %v751, %v753
      %v755 = vadd.f32 %v751, %v754
      %vm756 = vweird.f32 %v750
      %vm757 = vweird.f32 %v751
      %vm758 = vmor %vm756, %vm757
      %v759 = vsel %vm758, %v751, %v755
      %v760 = vand.u32 2147483647, %v750
      %vm761 = vcmp.eq.f32.partialorder %v760, 8.507059e+37
      %v762 = vand.u32 %v750, 2147483648
      %v763 = vor.u32 1.1754944e-38, %v762
      %v764 = vsel %vm761, %v763, %v759
      %v765 = vmul.f32 1.0, %v764
      %v766 = vtanh.pop %v746
      %768 = vrot.lane.b32.xlu0 %v714, 32
      %v769 = vpop.permute.xlu0 %768
      %v771 = vmul.f32 %v765, %v769
      %773 = vrot.lane.b32.xlu0 %v766, 32
      %v774 = vpop.permute.xlu0 %773
      %v776 = vmul.f32 %v765, %v774
      %778 = vrot.lane.b32.xlu0 %v776, 32
      %v779 = vpop.permute.xlu0 %778
      %v781 = vadd.f32 %v771, %v779
      %v782 = vtanh.pop %v781
      %784 = vrot.lane.b32.xlu0 %v782, 32
      %v785 = vpop.permute.xlu0 %784
      %v787 = vmul.f32 %v765, %v785
      %s788 = scalar_lea.vmem %s1, %s712
      %v789 = vld [vmem:[%s788] sm:$0x3]
      %791 = vrot.lane.b32.xlu0 %v787, 64
      %v792 = vpop.permute.xlu0 %791
      %v794 = vmul.f32 %v789, %v792
      %795 = vrot.lane.b32.xlu0 %v713, 64
      %v796 = vpop.permute.xlu0 %795
      %v798 = vsub.f32 %v787, %v796
      %800 = vrot.lane.b32.xlu0 %v798, 64
      %v801 = vpop.permute.xlu0 %800
      %v803 = vmul.f32 %v789, %v801
      %v804 = vadd.f32 %v713, %v803
      %805 = vst.msk [vmem:[#allocation3] sm:$0x3] %vm101, %v804
      %v806 = vsub.f32 %v781, %v769
      %808 = vrot.lane.b32.xlu0 %v806, 96
      %v809 = vpop.permute.xlu0 %808
      %v811 = vmul.f32 %v789, %v809
      %v812 = vadd.f32 %v714, %v811
      %813 = vst.msk [vmem:[#allocation4] sm:$0x3] %vm101, %v812
      %s814 = scalar_lea.vmem %s8, %s712
      %815 = vst.msk [vmem:[%s814] sm:$0x3] %vm101, %v794
    $region80: #{question_encoder_forward.1} parent=1 // pred_fallthru
      _
    // While loop
    $region81: #{question_encoder_forward.1} parent=1 // loop_pre_header
      _
    $region82: #{question_encoder_forward.1} parent=1 // loop_header
      %s817 = sphi 0, %s819
      %p818 = scmp.ge.s32.totalorder %s817, %s424
    $region83: #{question_encoder_forward.1} parent=1 // loop_header_branch
      %821 = sbr.rel (%p818) target = $region87
    $region84: #{question_encoder_forward.1} parent=1 // loop_body
      %s822 = sadd.s32 %s45, %s817
      %s823 = smul.u32 %s822, 2
      %s824 = scalar_lea.vmem %s8, %s823
      %825 = vst.msk [vmem:[%s824] sm:$0x3] %vm101, 0.0
    $region85: #{question_encoder_forward.1} parent=1 // loop_footer
      %s819 = sadd.s32 %s817, 1
    $region86: #{question_encoder_forward.1} parent=1 // loop_footer_branch
      %816 = sbr.rel target = $region82
    $region87: #{question_encoder_forward.1} parent=1 // loop_exit
      _
    %v826 = vld [vmem:[#allocation3] sm:$0x3]
    %827 = vst.msk [vmem:[#allocation5 + $0x2] sm:$0x3] %vm101, %v826
    %v828 = vld [vmem:[#allocation4] sm:$0x3]
    %829 = vst.msk [vmem:[#allocation5 + $0x6] sm:$0x3] %vm101, %v828
    %v830 = vld [vmem:[#allocation5] sm:$0x1]
    %v831 = vld [vmem:[#allocation5 + $0x4] sm:$0x1]
    %v833 = vrot.slane %v831, 7
    %vm835 = vcmask 1040384
    %v836 = vsel %vm835, %v830, %v833
    %v837 = vld [vmem:[%s6] sm:$0xff]
    %v838 = vld [vmem:[%s6 + $0x8] sm:$0xff]
    %v839 = vld [vmem:[%s6 + $0x10] sm:$0xff]
    %v840 = vld [vmem:[%s6 + $0x18] sm:$0xff]
    %v841 = vld [vmem:[#allocation5 + $0x1] sm:$0x1]
    %v842 = vld [vmem:[#allocation5 + $0x5] sm:$0x1]
    %v844 = vrot.slane %v842, 7
    %v846 = vsel %vm835, %v841, %v844
    %v847 = vld [vmem:[%s6 + $0x20] sm:$0xff]
    %v848 = vld [vmem:[%s6 + $0x28] sm:$0xff]
    %v849 = vld [vmem:[%s6 + $0x30] sm:$0xff]
    %v850 = vld [vmem:[%s6 + $0x38] sm:$0xff]
    %vm851 = vcmask 261120
    %v853 = vsel %vm851, %v846, 0
    %855 = vmatpush.msra.mxu0 0.0
    %856 = vmatpush.msra.mxu0 0.0
    %857 = vmatpush.msra.mxu0 0.0
    %858 = vmatpush.msra.mxu0 0.0
    %859 = vmatpush.msra.mxu0 0.0
    %860 = vmatpush.msra.mxu0 0.0
    %861 = vmatpush.msra.mxu0 0.0
    %862 = vmatpush.msra.mxu0 0.0
    %863 = vmatpush.msra.mxu0 0.0
    %864 = vmatpush.msra.mxu0 0.0
    %865 = vmatpush.msra.mxu0 0.0
    %866 = vmatpush.msra.mxu0 0.0
    %867 = vmatpush.msra.mxu0 %v850
    %868 = vmatpush.msra.mxu0 %v849
    %869 = vmatpush.msra.mxu0 %v848
    %870 = vmatpush.msra.mxu0 %v847
    %871 = vmatmul.f32.gmra.mxu0 %v853
    %v872 = vpop.f32.mrf.mxu0
    %v873 = vadd.f32 0.0, %v872
    %874 = vdwg.mxu0
    %v876 = vsel %vm851, %v836, 0
    %878 = vmatpush.msra.mxu0 0.0
    %879 = vmatpush.msra.mxu0 0.0
    %880 = vmatpush.msra.mxu0 0.0
    %881 = vmatpush.msra.mxu0 0.0
    %882 = vmatpush.msra.mxu0 0.0
    %883 = vmatpush.msra.mxu0 0.0
    %884 = vmatpush.msra.mxu0 0.0
    %885 = vmatpush.msra.mxu0 0.0
    %886 = vmatpush.msra.mxu0 0.0
    %887 = vmatpush.msra.mxu0 0.0
    %888 = vmatpush.msra.mxu0 0.0
    %889 = vmatpush.msra.mxu0 0.0
    %890 = vmatpush.msra.mxu0 %v840
    %891 = vmatpush.msra.mxu0 %v839
    %892 = vmatpush.msra.mxu0 %v838
    %893 = vmatpush.msra.mxu0 %v837
    %894 = vmatmul.f32.gmra.mxu0 %v876
    %v895 = vpop.f32.mrf.mxu0
    %v896 = vadd.f32 %v873, %v895
    %897 = vdwg.mxu0
    %v898 = vld [vmem:[#allocation5 + $0x2] sm:$0x1]
    %v899 = vld [vmem:[#allocation5 + $0x6] sm:$0x1]
    %v901 = vrot.slane %v899, 7
    %v903 = vsel %vm835, %v898, %v901
    %v904 = vld [vmem:[%s6 + $0x40] sm:$0xff]
    %v905 = vld [vmem:[%s6 + $0x48] sm:$0xff]
    %v906 = vld [vmem:[%s6 + $0x50] sm:$0xff]
    %v907 = vld [vmem:[%s6 + $0x58] sm:$0xff]
    %v909 = vsel %vm851, %v903, 0
    %911 = vmatpush.msra.mxu0 0.0
    %912 = vmatpush.msra.mxu0 0.0
    %913 = vmatpush.msra.mxu0 0.0
    %914 = vmatpush.msra.mxu0 0.0
    %915 = vmatpush.msra.mxu0 0.0
    %916 = vmatpush.msra.mxu0 0.0
    %917 = vmatpush.msra.mxu0 0.0
    %918 = vmatpush.msra.mxu0 0.0
    %919 = vmatpush.msra.mxu0 0.0
    %920 = vmatpush.msra.mxu0 0.0
    %921 = vmatpush.msra.mxu0 0.0
    %922 = vmatpush.msra.mxu0 0.0
    %923 = vmatpush.msra.mxu0 %v907
    %924 = vmatpush.msra.mxu0 %v906
    %925 = vmatpush.msra.mxu0 %v905
    %926 = vmatpush.msra.mxu0 %v904
    %927 = vmatmul.f32.gmra.mxu0 %v909
    %v928 = vpop.f32.mrf.mxu0
    %v929 = vadd.f32 0.0, %v928
    %930 = vdwg.mxu0
    %v931 = vadd.f32 %v896, %v929
    %v932 = vld [vmem:[#allocation5 + $0x3] sm:$0x1]
    %v933 = vld [vmem:[#allocation5 + $0x7] sm:$0x1]
    %v935 = vrot.slane %v933, 7
    %v937 = vsel %vm835, %v932, %v935
    %v938 = vld [vmem:[%s6 + $0x60] sm:$0xff]
    %v939 = vld [vmem:[%s6 + $0x68] sm:$0xff]
    %v940 = vld [vmem:[%s6 + $0x70] sm:$0xff]
    %v941 = vld [vmem:[%s6 + $0x78] sm:$0xff]
    %v943 = vsel %vm851, %v937, 0
    %945 = vmatpush.msra.mxu0 0.0
    %946 = vmatpush.msra.mxu0 0.0
    %947 = vmatpush.msra.mxu0 0.0
    %948 = vmatpush.msra.mxu0 0.0
    %949 = vmatpush.msra.mxu0 0.0
    %950 = vmatpush.msra.mxu0 0.0
    %951 = vmatpush.msra.mxu0 0.0
    %952 = vmatpush.msra.mxu0 0.0
    %953 = vmatpush.msra.mxu0 0.0
    %954 = vmatpush.msra.mxu0 0.0
    %955 = vmatpush.msra.mxu0 0.0
    %956 = vmatpush.msra.mxu0 0.0
    %957 = vmatpush.msra.mxu0 %v941
    %958 = vmatpush.msra.mxu0 %v940
    %959 = vmatpush.msra.mxu0 %v939
    %960 = vmatpush.msra.mxu0 %v938
    %961 = vmatmul.f32.gmra.mxu0 %v943
    %v962 = vpop.f32.mrf.mxu0
    %v963 = vadd.f32 0.0, %v962
    %964 = vdwg.mxu0
    %v965 = vadd.f32 %v931, %v963
    %v966 = vld [vmem:[%s7] sm:$0x1]
    %v968 = vperm.slane %v966, 0
    %v970 = vadd.f32 %v965, %v968
    %971 = vst.msk [vmem:[#allocation10] sm:$0x3] %vm101, %v970
    // Predicated region
    $region88: #{question_encoder_forward.1} parent=1 // pred_check
      _
    $region89: #{question_encoder_forward.1} parent=1 // pred_check_branch
      %973 = sbr.rel (0) target = $region91
    $region90: #{question_encoder_forward.1} parent=1 // pred_region
      _
    $region91: #{question_encoder_forward.1} parent=1 // pred_fallthru
      _
    // Predicated region
    $region92: #{question_encoder_forward.1} parent=1 // pred_check
      _
    $region93: #{question_encoder_forward.1} parent=1 // pred_check_branch
      %975 = sbr.rel (0) target = $region95
    $region94: #{question_encoder_forward.1} parent=1 // pred_region
      %977 = vsyncadd [#allocation8], 0
      %s979 = sshll.u32 [#allocation10], 4
      %s980 = int_to_ptr.vmem [resolvable:$true] %s979
      %s981 = sshll.u32 %s9, 4
      %s982 = int_to_ptr.hbm [resolvable:$true] %s981
      %984 = dma.vmem_to_hbm [thread:$0]  %s980, 32, %s982, [#allocation8]
    $region95: #{question_encoder_forward.1} parent=1 // pred_fallthru
      _
    // Predicated region
    $region96: #{question_encoder_forward.1} parent=1 // pred_check
      _
    $region97: #{question_encoder_forward.1} parent=1 // pred_check_branch
      %986 = sbr.rel (0) target = $region99
    $region98: #{question_encoder_forward.1} parent=1 // pred_region
      _
    $region99: #{question_encoder_forward.1} parent=1 // pred_fallthru
      _
    // Predicated region
    $region100: #{question_encoder_forward.1} parent=1 // pred_check
      _
    $region101: #{question_encoder_forward.1} parent=1 // pred_check_branch
      %988 = sbr.rel (0) target = $region103
    $region102: #{question_encoder_forward.1} parent=1 // pred_region
      %990 = dma.done [#allocation8], 32
    $region103: #{question_encoder_forward.1} parent=1 // pred_fallthru
      _
    %991 = vsyncpa [#allocation8], 1
    %992 = vsyncpa [#allocation9], 1

</llo_original>
